<compile_context>
chip_gen: v6e
topology: v6e:2x2x1
jax: 0.10.0
libtpu: 0.0.40
codegen_flags: <defaults>
</compile_context>

<pallas_src>
import functools

import jax
import jax.numpy as jnp
from jax import lax
from jax.experimental import pallas as pl
from jax.experimental.pallas import tpu as pltpu

_LANE = 128
_MAX_SMEM_IDS = 64 * 1024      # keep the 1-D SMEM id array <= ~256 KiB padded


def _gather_kernel(ids_ref, table_ref, out_ref, sem_ref, *, block_tokens, wave):
    """Gather `block_tokens` embedding rows from the HBM table.

    ids_ref:   SMEM (N_chunk,) int32 — scalar-prefetched token ids (chunk-global)
    table_ref: HBM  (V, E_pad) f32   — full embedding table (row 0 is zeros)
    out_ref:   VMEM (T, E_pad) f32   — pipelined output block (DMAs land here)
    sem_ref:   DMA semaphores (W,)   — one outstanding row DMA per slot
    """
    T = block_tokens
    W = wave
    n_waves = T // W
    base = pl.program_id(0) * T

    def start(tok, row, slot):
        # One table row, straight into the pipelined output block (no scratch).
        pltpu.make_async_copy(
            table_ref.at[pl.ds(row, 1), :],
            out_ref.at[pl.ds(tok, 1), :],
            sem_ref.at[slot],
        ).start()

    def wait(tok, slot):
        # Only transfer size + semaphore matter for a wait; row 0 is a dummy
        # source of identical size. Valid because every transfer is exactly one
        # (1, E_pad) row and each semaphore slot has exactly one DMA in flight.
        pltpu.make_async_copy(
            table_ref.at[pl.ds(0, 1), :],
            out_ref.at[pl.ds(tok, 1), :],
            sem_ref.at[slot],
        ).wait()

    # Prime wave 0: W row DMAs in flight, one per semaphore slot.
    for u in range(W):
        start(u, ids_ref[base + u], u)

    # Steady state: while wave k is in flight, read wave k+1's ids first (SMEM
    # reads hoisted above every semaphore wait), then retire wave k token by
    # token, immediately reissuing each freed slot for wave k+1.
    def wave_body(k, carry):
        t_cur = k * W
        t_nxt = t_cur + W
        rows_next = [ids_ref[base + t_nxt + u] for u in range(W)]  # hoisted
        for u in range(W):
            wait(t_cur + u, u)
            start(t_nxt + u, rows_next[u], u)
        return carry

    steady = n_waves - 1
    if steady > 0:
        lax.fori_loop(0, steady, wave_body, 0,
                      unroll=True if steady <= 8 else 2)

    # Drain the final wave.
    t_last = (n_waves - 1) * W
    for u in range(W):
        wait(t_last + u, u)


def _choose_tiling(n_tokens, e_pad, tokens_per_block, dma_wave):
    """Pick (tokens_per_block T, dma_wave W) with T % W == 0, T % 8 == 0."""
    w_req = max(8, (int(dma_wave) // 8) * 8)
    if tokens_per_block is None:
        # Keep the double-buffered output slab (2 * T * E_pad * 4B) ~16 MiB:
        # fits v7x's 64 MiB VMEM and amortizes per-grid-step overhead on v5e/v6e.
        budget = 16 * 1024 * 1024
        t = budget // (2 * e_pad * 4)
        t = int(max(w_req, min(t, 4096)))
    else:
        t = int(tokens_per_block)
        assert t >= 8 and t % 8 == 0, "tokens_per_block must be a multiple of 8"
    # Keep >= 2 grid blocks whenever possible so v7x's 2 TensorCores both work.
    if n_tokens > 8:
        half = -(-n_tokens // 2)
        half = -(-half // 8) * 8
        t = min(t, half)
    # Align the block to the DMA wave (or shrink the wave for tiny blocks).
    if t >= w_req:
        t = (t // w_req) * w_req
        w = w_req
    else:
        t = max(8, (t // 8) * 8)
        w = t
    return t, w


def _gather_chunk(ids_chunk, table_pad, t, w):
    """ids_chunk: (n_pad,) int32 with n_pad % t == 0. Returns (n_pad, E_pad)."""
    n_pad = ids_chunk.shape[0]
    _, e_pad = table_pad.shape
    n_blocks = n_pad // t
    kernel = functools.partial(_gather_kernel, block_tokens=t, wave=w)
    # Double-buffered output slab + headroom; explicit so v5e's 16 MiB scoped
    # default never limits T, while staying under v7x's 64 MiB physical VMEM.
    vmem_limit = min(64 * 1024 * 1024,
                     max(32 * 1024 * 1024, 2 * t * e_pad * 4 + (4 << 20)))
    return pl.pallas_call(
        kernel,
        out_shape=jax.ShapeDtypeStruct((n_pad, e_pad), table_pad.dtype),
        grid_spec=pltpu.PrefetchScalarGridSpec(
            num_scalar_prefetch=1,                         # token ids -> SMEM
            grid=(n_blocks,),
            in_specs=[pl.BlockSpec(memory_space=pl.ANY)],  # table stays in HBM
            out_specs=pl.BlockSpec((t, e_pad), lambda i, ids: (i, 0)),
            scratch_shapes=[pltpu.SemaphoreType.DMA((w,))],
        ),
        compiler_params=pltpu.CompilerParams(
            dimension_semantics=("parallel",),             # v7x: shard over 2 TCs
            vmem_limit_bytes=vmem_limit,
        ),
    )(ids_chunk, table_pad)


def word_embedding(indices, table, *, tokens_per_block=None, dma_wave=16):
    """Pallas TPU equivalent of WordEmbedding.forward(x): out[b, s, :] = table[x[b, s], :]."""
    b, s = indices.shape
    v, e = table.shape
    n = b * s

    # Lane-align the embedding width (e.g. 300 -> 384): aligned row DMAs and a
    # lane-dense, unmasked output writeback. Pad is sliced off at the end.
    # (For production, store the table pre-padded to avoid the per-call pad.)
    e_pad = -(-e // _LANE) * _LANE
    table_pad = table if e_pad == e else jnp.pad(table, ((0, 0), (0, e_pad - e)))

    # PyTorch LongTensor -> int32; clamp out-of-range ids (PyTorch would raise).
    ids = jnp.clip(indices.reshape(n).astype(jnp.int32), 0, v - 1)

    t, w = _choose_tiling(n, e_pad, tokens_per_block, dma_wave)

    # Chunk very large batches so the scalar-prefetched 1-D id array stays small
    # in SMEM (1-D SMEM pads to next_pow2(4 * len)).
    chunk = max(t, (_MAX_SMEM_IDS // t) * t)
    outs = []
    for c0 in range(0, n, chunk):
        ids_c = ids[c0:min(c0 + chunk, n)]
        n_c = ids_c.shape[0]
        n_c_pad = -(-n_c // t) * t
        if n_c_pad != n_c:
            # Pad with padding_idx=0 tokens; padded rows are sliced off below.
            ids_c = jnp.concatenate(
                [ids_c, jnp.zeros((n_c_pad - n_c,), jnp.int32)], axis=0)
        outs.append(_gather_chunk(ids_c, table_pad, t, w)[:n_c])
    out_flat = outs[0] if len(outs) == 1 else jnp.concatenate(outs, axis=0)

    return out_flat[:, :e].reshape(b, s, e)


def init_embedding_table(key, vocab_size, embed_size):
    """Init matching nn.Embedding(padding_idx=0): N(0,1) weights, row 0 zeroed."""
    wgt = jax.random.normal(key, (vocab_size, embed_size), dtype=jnp.float32)
    return wgt.at[0].set(0.0)


if __name__ == "__main__":
    # Module-consistent small shapes: default embed_size=300 (padded to 384
    # lanes inside the wrapper), a modest vocab, and a 2x32 id batch so the
    # kernel exercises the prime / steady / drain phases and >= 2 grid blocks.
    vocab_size = 1000
    embed_size = 300
    batch, seq = 2, 32

    key = jax.random.PRNGKey(0)
    k_tab, k_idx = jax.random.split(key)

    table = init_embedding_table(k_tab, vocab_size, embed_size)
    idx = jax.random.randint(k_idx, (batch, seq), minval=0, maxval=vocab_size,
                             dtype=jnp.int32)
    idx = idx.at[0, 0].set(0).at[1, 3].set(0)   # a couple of padding tokens

    out = word_embedding(idx, table)
    out = jax.block_until_ready(out)

    # Reference: nn.Embedding forward == row gather.
    ref = jnp.take(table, idx, axis=0)
    assert out.shape == (batch, seq, embed_size)
    assert jnp.array_equal(out, ref), "mismatch vs. reference gather"
    assert bool(jnp.all(out[0, 0] == 0.0)) and bool(jnp.all(out[1, 3] == 0.0))

    print("KERNEL_OK")
</pallas_src>

<mosaic_0001>
module attributes {stable_mosaic.version = 11 : i64} {
  func.func @_gather_kernel(%arg0: i32, %arg1: memref<64xi32, #tpu.memory_space<smem>>, %arg2: memref<1000x384xf32, #tpu.memory_space<any>>, %arg3: memref<32x384xf32, #tpu.memory_space<vmem>>, %arg4: memref<16x!tpu.dma_semaphore, #tpu.memory_space<semaphore_mem>>) attributes {dimension_semantics = [#tpu.dimension_semantics<parallel>], iteration_bounds = array<i64: 2>, scalar_prefetch = 1 : i64, scratch_operands = 1 : i64, tpu.core_type = #tpu.core_type<tc>, window_params = [{}, {transform_indices = @transform_1, window_bounds = array<i64: 32, 384>}]} {
    %c32_i32 = arith.constant 32 : i32
    %0 = arith.muli %arg0, %c32_i32 : i32
    %c0_i32 = arith.constant 0 : i32
    %1 = arith.addi %0, %c0_i32 : i32
    %2 = arith.index_cast %1 : i32 to index
    %3 = memref.load %arg1[%2] : memref<64xi32, #tpu.memory_space<smem>>
    %c0_i32_0 = arith.constant 0 : i32
    %c0_i32_1 = arith.constant 0 : i32
    %4 = tpu.memref_slice %arg2[%3, %c0_i32_1] : memref<1000x384xf32, #tpu.memory_space<any>> -> memref<1x384xf32, #tpu.memory_space<any>>
    %c0_i32_2 = arith.constant 0 : i32
    %c0_i32_3 = arith.constant 0 : i32
    %5 = tpu.memref_slice %arg3[%c0_i32_2, %c0_i32_3] : memref<32x384xf32, #tpu.memory_space<vmem>> -> memref<1x384xf32, #tpu.memory_space<vmem>>
    %6 = tpu.memref_slice %arg4[%c0_i32_0] : memref<16x!tpu.dma_semaphore, #tpu.memory_space<semaphore_mem>> -> memref<1x!tpu.dma_semaphore, #tpu.memory_space<semaphore_mem>>
    %7 = tpu.memref_squeeze %6 : memref<1x!tpu.dma_semaphore, #tpu.memory_space<semaphore_mem>> -> memref<!tpu.dma_semaphore, #tpu.memory_space<semaphore_mem>>
    tpu.enqueue_dma source(%4 : memref<1x384xf32, #tpu.memory_space<any>>) target(%5 : memref<1x384xf32, #tpu.memory_space<vmem>>) target_semaphore(%7 : memref<!tpu.dma_semaphore, #tpu.memory_space<semaphore_mem>>)
    %c1_i32 = arith.constant 1 : i32
    %8 = arith.addi %0, %c1_i32 : i32
    %9 = arith.index_cast %8 : i32 to index
    %10 = memref.load %arg1[%9] : memref<64xi32, #tpu.memory_space<smem>>
    %c1_i32_4 = arith.constant 1 : i32
    %c0_i32_5 = arith.constant 0 : i32
    %11 = tpu.memref_slice %arg2[%10, %c0_i32_5] : memref<1000x384xf32, #tpu.memory_space<any>> -> memref<1x384xf32, #tpu.memory_space<any>>
    %c1_i32_6 = arith.constant 1 : i32
    %c0_i32_7 = arith.constant 0 : i32
    %12 = tpu.memref_slice %arg3[%c1_i32_6, %c0_i32_7] : memref<32x384xf32, #tpu.memory_space<vmem>> -> memref<1x384xf32, #tpu.memory_space<vmem>>
    %13 = tpu.memref_slice %arg4[%c1_i32_4] : memref<16x!tpu.dma_semaphore, #tpu.memory_space<semaphore_mem>> -> memref<1x!tpu.dma_semaphore, #tpu.memory_space<semaphore_mem>>
    %14 = tpu.memref_squeeze %13 : memref<1x!tpu.dma_semaphore, #tpu.memory_space<semaphore_mem>> -> memref<!tpu.dma_semaphore, #tpu.memory_space<semaphore_mem>>
    tpu.enqueue_dma source(%11 : memref<1x384xf32, #tpu.memory_space<any>>) target(%12 : memref<1x384xf32, #tpu.memory_space<vmem>>) target_semaphore(%14 : memref<!tpu.dma_semaphore, #tpu.memory_space<semaphore_mem>>)
    %c2_i32 = arith.constant 2 : i32
    %15 = arith.addi %0, %c2_i32 : i32
    %16 = arith.index_cast %15 : i32 to index
    %17 = memref.load %arg1[%16] : memref<64xi32, #tpu.memory_space<smem>>
    %c2_i32_8 = arith.constant 2 : i32
    %c0_i32_9 = arith.constant 0 : i32
    %18 = tpu.memref_slice %arg2[%17, %c0_i32_9] : memref<1000x384xf32, #tpu.memory_space<any>> -> memref<1x384xf32, #tpu.memory_space<any>>
    %c2_i32_10 = arith.constant 2 : i32
    %c0_i32_11 = arith.constant 0 : i32
    %19 = tpu.memref_slice %arg3[%c2_i32_10, %c0_i32_11] : memref<32x384xf32, #tpu.memory_space<vmem>> -> memref<1x384xf32, #tpu.memory_space<vmem>>
    %20 = tpu.memref_slice %arg4[%c2_i32_8] : memref<16x!tpu.dma_semaphore, #tpu.memory_space<semaphore_mem>> -> memref<1x!tpu.dma_semaphore, #tpu.memory_space<semaphore_mem>>
    %21 = tpu.memref_squeeze %20 : memref<1x!tpu.dma_semaphore, #tpu.memory_space<semaphore_mem>> -> memref<!tpu.dma_semaphore, #tpu.memory_space<semaphore_mem>>
    tpu.enqueue_dma source(%18 : memref<1x384xf32, #tpu.memory_space<any>>) target(%19 : memref<1x384xf32, #tpu.memory_space<vmem>>) target_semaphore(%21 : memref<!tpu.dma_semaphore, #tpu.memory_space<semaphore_mem>>)
    %c3_i32 = arith.constant 3 : i32
    %22 = arith.addi %0, %c3_i32 : i32
    %23 = arith.index_cast %22 : i32 to index
    %24 = memref.load %arg1[%23] : memref<64xi32, #tpu.memory_space<smem>>
    %c3_i32_12 = arith.constant 3 : i32
    %c0_i32_13 = arith.constant 0 : i32
    %25 = tpu.memref_slice %arg2[%24, %c0_i32_13] : memref<1000x384xf32, #tpu.memory_space<any>> -> memref<1x384xf32, #tpu.memory_space<any>>
    %c3_i32_14 = arith.constant 3 : i32
    %c0_i32_15 = arith.constant 0 : i32
    %26 = tpu.memref_slice %arg3[%c3_i32_14, %c0_i32_15] : memref<32x384xf32, #tpu.memory_space<vmem>> -> memref<1x384xf32, #tpu.memory_space<vmem>>
    %27 = tpu.memref_slice %arg4[%c3_i32_12] : memref<16x!tpu.dma_semaphore, #tpu.memory_space<semaphore_mem>> -> memref<1x!tpu.dma_semaphore, #tpu.memory_space<semaphore_mem>>
    %28 = tpu.memref_squeeze %27 : memref<1x!tpu.dma_semaphore, #tpu.memory_space<semaphore_mem>> -> memref<!tpu.dma_semaphore, #tpu.memory_space<semaphore_mem>>
    tpu.enqueue_dma source(%25 : memref<1x384xf32, #tpu.memory_space<any>>) target(%26 : memref<1x384xf32, #tpu.memory_space<vmem>>) target_semaphore(%28 : memref<!tpu.dma_semaphore, #tpu.memory_space<semaphore_mem>>)
    %c4_i32 = arith.constant 4 : i32
    %29 = arith.addi %0, %c4_i32 : i32
    %30 = arith.index_cast %29 : i32 to index
    %31 = memref.load %arg1[%30] : memref<64xi32, #tpu.memory_space<smem>>
    %c4_i32_16 = arith.constant 4 : i32
    %c0_i32_17 = arith.constant 0 : i32
    %32 = tpu.memref_slice %arg2[%31, %c0_i32_17] : memref<1000x384xf32, #tpu.memory_space<any>> -> memref<1x384xf32, #tpu.memory_space<any>>
    %c4_i32_18 = arith.constant 4 : i32
    %c0_i32_19 = arith.constant 0 : i32
    %33 = tpu.memref_slice %arg3[%c4_i32_18, %c0_i32_19] : memref<32x384xf32, #tpu.memory_space<vmem>> -> memref<1x384xf32, #tpu.memory_space<vmem>>
    %34 = tpu.memref_slice %arg4[%c4_i32_16] : memref<16x!tpu.dma_semaphore, #tpu.memory_space<semaphore_mem>> -> memref<1x!tpu.dma_semaphore, #tpu.memory_space<semaphore_mem>>
    %35 = tpu.memref_squeeze %34 : memref<1x!tpu.dma_semaphore, #tpu.memory_space<semaphore_mem>> -> memref<!tpu.dma_semaphore, #tpu.memory_space<semaphore_mem>>
    tpu.enqueue_dma source(%32 : memref<1x384xf32, #tpu.memory_space<any>>) target(%33 : memref<1x384xf32, #tpu.memory_space<vmem>>) target_semaphore(%35 : memref<!tpu.dma_semaphore, #tpu.memory_space<semaphore_mem>>)
    %c5_i32 = arith.constant 5 : i32
    %36 = arith.addi %0, %c5_i32 : i32
    %37 = arith.index_cast %36 : i32 to index
    %38 = memref.load %arg1[%37] : memref<64xi32, #tpu.memory_space<smem>>
    %c5_i32_20 = arith.constant 5 : i32
    %c0_i32_21 = arith.constant 0 : i32
    %39 = tpu.memref_slice %arg2[%38, %c0_i32_21] : memref<1000x384xf32, #tpu.memory_space<any>> -> memref<1x384xf32, #tpu.memory_space<any>>
    %c5_i32_22 = arith.constant 5 : i32
    %c0_i32_23 = arith.constant 0 : i32
    %40 = tpu.memref_slice %arg3[%c5_i32_22, %c0_i32_23] : memref<32x384xf32, #tpu.memory_space<vmem>> -> memref<1x384xf32, #tpu.memory_space<vmem>>
    %41 = tpu.memref_slice %arg4[%c5_i32_20] : memref<16x!tpu.dma_semaphore, #tpu.memory_space<semaphore_mem>> -> memref<1x!tpu.dma_semaphore, #tpu.memory_space<semaphore_mem>>
    %42 = tpu.memref_squeeze %41 : memref<1x!tpu.dma_semaphore, #tpu.memory_space<semaphore_mem>> -> memref<!tpu.dma_semaphore, #tpu.memory_space<semaphore_mem>>
    tpu.enqueue_dma source(%39 : memref<1x384xf32, #tpu.memory_space<any>>) target(%40 : memref<1x384xf32, #tpu.memory_space<vmem>>) target_semaphore(%42 : memref<!tpu.dma_semaphore, #tpu.memory_space<semaphore_mem>>)
    %c6_i32 = arith.constant 6 : i32
    %43 = arith.addi %0, %c6_i32 : i32
    %44 = arith.index_cast %43 : i32 to index
    %45 = memref.load %arg1[%44] : memref<64xi32, #tpu.memory_space<smem>>
    %c6_i32_24 = arith.constant 6 : i32
    %c0_i32_25 = arith.constant 0 : i32
    %46 = tpu.memref_slice %arg2[%45, %c0_i32_25] : memref<1000x384xf32, #tpu.memory_space<any>> -> memref<1x384xf32, #tpu.memory_space<any>>
    %c6_i32_26 = arith.constant 6 : i32
    %c0_i32_27 = arith.constant 0 : i32
    %47 = tpu.memref_slice %arg3[%c6_i32_26, %c0_i32_27] : memref<32x384xf32, #tpu.memory_space<vmem>> -> memref<1x384xf32, #tpu.memory_space<vmem>>
    %48 = tpu.memref_slice %arg4[%c6_i32_24] : memref<16x!tpu.dma_semaphore, #tpu.memory_space<semaphore_mem>> -> memref<1x!tpu.dma_semaphore, #tpu.memory_space<semaphore_mem>>
    %49 = tpu.memref_squeeze %48 : memref<1x!tpu.dma_semaphore, #tpu.memory_space<semaphore_mem>> -> memref<!tpu.dma_semaphore, #tpu.memory_space<semaphore_mem>>
    tpu.enqueue_dma source(%46 : memref<1x384xf32, #tpu.memory_space<any>>) target(%47 : memref<1x384xf32, #tpu.memory_space<vmem>>) target_semaphore(%49 : memref<!tpu.dma_semaphore, #tpu.memory_space<semaphore_mem>>)
    %c7_i32 = arith.constant 7 : i32
    %50 = arith.addi %0, %c7_i32 : i32
    %51 = arith.index_cast %50 : i32 to index
    %52 = memref.load %arg1[%51] : memref<64xi32, #tpu.memory_space<smem>>
    %c7_i32_28 = arith.constant 7 : i32
    %c0_i32_29 = arith.constant 0 : i32
    %53 = tpu.memref_slice %arg2[%52, %c0_i32_29] : memref<1000x384xf32, #tpu.memory_space<any>> -> memref<1x384xf32, #tpu.memory_space<any>>
    %c7_i32_30 = arith.constant 7 : i32
    %c0_i32_31 = arith.constant 0 : i32
    %54 = tpu.memref_slice %arg3[%c7_i32_30, %c0_i32_31] : memref<32x384xf32, #tpu.memory_space<vmem>> -> memref<1x384xf32, #tpu.memory_space<vmem>>
    %55 = tpu.memref_slice %arg4[%c7_i32_28] : memref<16x!tpu.dma_semaphore, #tpu.memory_space<semaphore_mem>> -> memref<1x!tpu.dma_semaphore, #tpu.memory_space<semaphore_mem>>
    %56 = tpu.memref_squeeze %55 : memref<1x!tpu.dma_semaphore, #tpu.memory_space<semaphore_mem>> -> memref<!tpu.dma_semaphore, #tpu.memory_space<semaphore_mem>>
    tpu.enqueue_dma source(%53 : memref<1x384xf32, #tpu.memory_space<any>>) target(%54 : memref<1x384xf32, #tpu.memory_space<vmem>>) target_semaphore(%56 : memref<!tpu.dma_semaphore, #tpu.memory_space<semaphore_mem>>)
    %c8_i32 = arith.constant 8 : i32
    %57 = arith.addi %0, %c8_i32 : i32
    %58 = arith.index_cast %57 : i32 to index
    %59 = memref.load %arg1[%58] : memref<64xi32, #tpu.memory_space<smem>>
    %c8_i32_32 = arith.constant 8 : i32
    %c0_i32_33 = arith.constant 0 : i32
    %60 = tpu.memref_slice %arg2[%59, %c0_i32_33] : memref<1000x384xf32, #tpu.memory_space<any>> -> memref<1x384xf32, #tpu.memory_space<any>>
    %c8_i32_34 = arith.constant 8 : i32
    %c0_i32_35 = arith.constant 0 : i32
    %61 = tpu.memref_slice %arg3[%c8_i32_34, %c0_i32_35] : memref<32x384xf32, #tpu.memory_space<vmem>> -> memref<1x384xf32, #tpu.memory_space<vmem>>
    %62 = tpu.memref_slice %arg4[%c8_i32_32] : memref<16x!tpu.dma_semaphore, #tpu.memory_space<semaphore_mem>> -> memref<1x!tpu.dma_semaphore, #tpu.memory_space<semaphore_mem>>
    %63 = tpu.memref_squeeze %62 : memref<1x!tpu.dma_semaphore, #tpu.memory_space<semaphore_mem>> -> memref<!tpu.dma_semaphore, #tpu.memory_space<semaphore_mem>>
    tpu.enqueue_dma source(%60 : memref<1x384xf32, #tpu.memory_space<any>>) target(%61 : memref<1x384xf32, #tpu.memory_space<vmem>>) target_semaphore(%63 : memref<!tpu.dma_semaphore, #tpu.memory_space<semaphore_mem>>)
    %c9_i32 = arith.constant 9 : i32
    %64 = arith.addi %0, %c9_i32 : i32
    %65 = arith.index_cast %64 : i32 to index
    %66 = memref.load %arg1[%65] : memref<64xi32, #tpu.memory_space<smem>>
    %c9_i32_36 = arith.constant 9 : i32
    %c0_i32_37 = arith.constant 0 : i32
    %67 = tpu.memref_slice %arg2[%66, %c0_i32_37] : memref<1000x384xf32, #tpu.memory_space<any>> -> memref<1x384xf32, #tpu.memory_space<any>>
    %c9_i32_38 = arith.constant 9 : i32
    %c0_i32_39 = arith.constant 0 : i32
    %68 = tpu.memref_slice %arg3[%c9_i32_38, %c0_i32_39] : memref<32x384xf32, #tpu.memory_space<vmem>> -> memref<1x384xf32, #tpu.memory_space<vmem>>
    %69 = tpu.memref_slice %arg4[%c9_i32_36] : memref<16x!tpu.dma_semaphore, #tpu.memory_space<semaphore_mem>> -> memref<1x!tpu.dma_semaphore, #tpu.memory_space<semaphore_mem>>
    %70 = tpu.memref_squeeze %69 : memref<1x!tpu.dma_semaphore, #tpu.memory_space<semaphore_mem>> -> memref<!tpu.dma_semaphore, #tpu.memory_space<semaphore_mem>>
    tpu.enqueue_dma source(%67 : memref<1x384xf32, #tpu.memory_space<any>>) target(%68 : memref<1x384xf32, #tpu.memory_space<vmem>>) target_semaphore(%70 : memref<!tpu.dma_semaphore, #tpu.memory_space<semaphore_mem>>)
    %c10_i32 = arith.constant 10 : i32
    %71 = arith.addi %0, %c10_i32 : i32
    %72 = arith.index_cast %71 : i32 to index
    %73 = memref.load %arg1[%72] : memref<64xi32, #tpu.memory_space<smem>>
    %c10_i32_40 = arith.constant 10 : i32
    %c0_i32_41 = arith.constant 0 : i32
    %74 = tpu.memref_slice %arg2[%73, %c0_i32_41] : memref<1000x384xf32, #tpu.memory_space<any>> -> memref<1x384xf32, #tpu.memory_space<any>>
    %c10_i32_42 = arith.constant 10 : i32
    %c0_i32_43 = arith.constant 0 : i32
    %75 = tpu.memref_slice %arg3[%c10_i32_42, %c0_i32_43] : memref<32x384xf32, #tpu.memory_space<vmem>> -> memref<1x384xf32, #tpu.memory_space<vmem>>
    %76 = tpu.memref_slice %arg4[%c10_i32_40] : memref<16x!tpu.dma_semaphore, #tpu.memory_space<semaphore_mem>> -> memref<1x!tpu.dma_semaphore, #tpu.memory_space<semaphore_mem>>
    %77 = tpu.memref_squeeze %76 : memref<1x!tpu.dma_semaphore, #tpu.memory_space<semaphore_mem>> -> memref<!tpu.dma_semaphore, #tpu.memory_space<semaphore_mem>>
    tpu.enqueue_dma source(%74 : memref<1x384xf32, #tpu.memory_space<any>>) target(%75 : memref<1x384xf32, #tpu.memory_space<vmem>>) target_semaphore(%77 : memref<!tpu.dma_semaphore, #tpu.memory_space<semaphore_mem>>)
    %c11_i32 = arith.constant 11 : i32
    %78 = arith.addi %0, %c11_i32 : i32
    %79 = arith.index_cast %78 : i32 to index
    %80 = memref.load %arg1[%79] : memref<64xi32, #tpu.memory_space<smem>>
    %c11_i32_44 = arith.constant 11 : i32
    %c0_i32_45 = arith.constant 0 : i32
    %81 = tpu.memref_slice %arg2[%80, %c0_i32_45] : memref<1000x384xf32, #tpu.memory_space<any>> -> memref<1x384xf32, #tpu.memory_space<any>>
    %c11_i32_46 = arith.constant 11 : i32
    %c0_i32_47 = arith.constant 0 : i32
    %82 = tpu.memref_slice %arg3[%c11_i32_46, %c0_i32_47] : memref<32x384xf32, #tpu.memory_space<vmem>> -> memref<1x384xf32, #tpu.memory_space<vmem>>
    %83 = tpu.memref_slice %arg4[%c11_i32_44] : memref<16x!tpu.dma_semaphore, #tpu.memory_space<semaphore_mem>> -> memref<1x!tpu.dma_semaphore, #tpu.memory_space<semaphore_mem>>
    %84 = tpu.memref_squeeze %83 : memref<1x!tpu.dma_semaphore, #tpu.memory_space<semaphore_mem>> -> memref<!tpu.dma_semaphore, #tpu.memory_space<semaphore_mem>>
    tpu.enqueue_dma source(%81 : memref<1x384xf32, #tpu.memory_space<any>>) target(%82 : memref<1x384xf32, #tpu.memory_space<vmem>>) target_semaphore(%84 : memref<!tpu.dma_semaphore, #tpu.memory_space<semaphore_mem>>)
    %c12_i32 = arith.constant 12 : i32
    %85 = arith.addi %0, %c12_i32 : i32
    %86 = arith.index_cast %85 : i32 to index
    %87 = memref.load %arg1[%86] : memref<64xi32, #tpu.memory_space<smem>>
    %c12_i32_48 = arith.constant 12 : i32
    %c0_i32_49 = arith.constant 0 : i32
    %88 = tpu.memref_slice %arg2[%87, %c0_i32_49] : memref<1000x384xf32, #tpu.memory_space<any>> -> memref<1x384xf32, #tpu.memory_space<any>>
    %c12_i32_50 = arith.constant 12 : i32
    %c0_i32_51 = arith.constant 0 : i32
    %89 = tpu.memref_slice %arg3[%c12_i32_50, %c0_i32_51] : memref<32x384xf32, #tpu.memory_space<vmem>> -> memref<1x384xf32, #tpu.memory_space<vmem>>
    %90 = tpu.memref_slice %arg4[%c12_i32_48] : memref<16x!tpu.dma_semaphore, #tpu.memory_space<semaphore_mem>> -> memref<1x!tpu.dma_semaphore, #tpu.memory_space<semaphore_mem>>
    %91 = tpu.memref_squeeze %90 : memref<1x!tpu.dma_semaphore, #tpu.memory_space<semaphore_mem>> -> memref<!tpu.dma_semaphore, #tpu.memory_space<semaphore_mem>>
    tpu.enqueue_dma source(%88 : memref<1x384xf32, #tpu.memory_space<any>>) target(%89 : memref<1x384xf32, #tpu.memory_space<vmem>>) target_semaphore(%91 : memref<!tpu.dma_semaphore, #tpu.memory_space<semaphore_mem>>)
    %c13_i32 = arith.constant 13 : i32
    %92 = arith.addi %0, %c13_i32 : i32
    %93 = arith.index_cast %92 : i32 to index
    %94 = memref.load %arg1[%93] : memref<64xi32, #tpu.memory_space<smem>>
    %c13_i32_52 = arith.constant 13 : i32
    %c0_i32_53 = arith.constant 0 : i32
    %95 = tpu.memref_slice %arg2[%94, %c0_i32_53] : memref<1000x384xf32, #tpu.memory_space<any>> -> memref<1x384xf32, #tpu.memory_space<any>>
    %c13_i32_54 = arith.constant 13 : i32
    %c0_i32_55 = arith.constant 0 : i32
    %96 = tpu.memref_slice %arg3[%c13_i32_54, %c0_i32_55] : memref<32x384xf32, #tpu.memory_space<vmem>> -> memref<1x384xf32, #tpu.memory_space<vmem>>
    %97 = tpu.memref_slice %arg4[%c13_i32_52] : memref<16x!tpu.dma_semaphore, #tpu.memory_space<semaphore_mem>> -> memref<1x!tpu.dma_semaphore, #tpu.memory_space<semaphore_mem>>
    %98 = tpu.memref_squeeze %97 : memref<1x!tpu.dma_semaphore, #tpu.memory_space<semaphore_mem>> -> memref<!tpu.dma_semaphore, #tpu.memory_space<semaphore_mem>>
    tpu.enqueue_dma source(%95 : memref<1x384xf32, #tpu.memory_space<any>>) target(%96 : memref<1x384xf32, #tpu.memory_space<vmem>>) target_semaphore(%98 : memref<!tpu.dma_semaphore, #tpu.memory_space<semaphore_mem>>)
    %c14_i32 = arith.constant 14 : i32
    %99 = arith.addi %0, %c14_i32 : i32
    %100 = arith.index_cast %99 : i32 to index
    %101 = memref.load %arg1[%100] : memref<64xi32, #tpu.memory_space<smem>>
    %c14_i32_56 = arith.constant 14 : i32
    %c0_i32_57 = arith.constant 0 : i32
    %102 = tpu.memref_slice %arg2[%101, %c0_i32_57] : memref<1000x384xf32, #tpu.memory_space<any>> -> memref<1x384xf32, #tpu.memory_space<any>>
    %c14_i32_58 = arith.constant 14 : i32
    %c0_i32_59 = arith.constant 0 : i32
    %103 = tpu.memref_slice %arg3[%c14_i32_58, %c0_i32_59] : memref<32x384xf32, #tpu.memory_space<vmem>> -> memref<1x384xf32, #tpu.memory_space<vmem>>
    %104 = tpu.memref_slice %arg4[%c14_i32_56] : memref<16x!tpu.dma_semaphore, #tpu.memory_space<semaphore_mem>> -> memref<1x!tpu.dma_semaphore, #tpu.memory_space<semaphore_mem>>
    %105 = tpu.memref_squeeze %104 : memref<1x!tpu.dma_semaphore, #tpu.memory_space<semaphore_mem>> -> memref<!tpu.dma_semaphore, #tpu.memory_space<semaphore_mem>>
    tpu.enqueue_dma source(%102 : memref<1x384xf32, #tpu.memory_space<any>>) target(%103 : memref<1x384xf32, #tpu.memory_space<vmem>>) target_semaphore(%105 : memref<!tpu.dma_semaphore, #tpu.memory_space<semaphore_mem>>)
    %c15_i32 = arith.constant 15 : i32
    %106 = arith.addi %0, %c15_i32 : i32
    %107 = arith.index_cast %106 : i32 to index
    %108 = memref.load %arg1[%107] : memref<64xi32, #tpu.memory_space<smem>>
    %c15_i32_60 = arith.constant 15 : i32
    %c0_i32_61 = arith.constant 0 : i32
    %109 = tpu.memref_slice %arg2[%108, %c0_i32_61] : memref<1000x384xf32, #tpu.memory_space<any>> -> memref<1x384xf32, #tpu.memory_space<any>>
    %c15_i32_62 = arith.constant 15 : i32
    %c0_i32_63 = arith.constant 0 : i32
    %110 = tpu.memref_slice %arg3[%c15_i32_62, %c0_i32_63] : memref<32x384xf32, #tpu.memory_space<vmem>> -> memref<1x384xf32, #tpu.memory_space<vmem>>
    %111 = tpu.memref_slice %arg4[%c15_i32_60] : memref<16x!tpu.dma_semaphore, #tpu.memory_space<semaphore_mem>> -> memref<1x!tpu.dma_semaphore, #tpu.memory_space<semaphore_mem>>
    %112 = tpu.memref_squeeze %111 : memref<1x!tpu.dma_semaphore, #tpu.memory_space<semaphore_mem>> -> memref<!tpu.dma_semaphore, #tpu.memory_space<semaphore_mem>>
    tpu.enqueue_dma source(%109 : memref<1x384xf32, #tpu.memory_space<any>>) target(%110 : memref<1x384xf32, #tpu.memory_space<vmem>>) target_semaphore(%112 : memref<!tpu.dma_semaphore, #tpu.memory_space<semaphore_mem>>)
    %c0_i32_64 = arith.constant 0 : i32
    %c16_i32 = arith.constant 16 : i32
    %113 = arith.muli %c0_i32_64, %c16_i32 : i32
    %c16_i32_65 = arith.constant 16 : i32
    %114 = arith.addi %113, %c16_i32_65 : i32
    %115 = arith.addi %0, %114 : i32
    %c0_i32_66 = arith.constant 0 : i32
    %116 = arith.addi %115, %c0_i32_66 : i32
    %117 = arith.index_cast %116 : i32 to index
    %118 = memref.load %arg1[%117] : memref<64xi32, #tpu.memory_space<smem>>
    %119 = arith.addi %0, %114 : i32
    %c1_i32_67 = arith.constant 1 : i32
    %120 = arith.addi %119, %c1_i32_67 : i32
    %121 = arith.index_cast %120 : i32 to index
    %122 = memref.load %arg1[%121] : memref<64xi32, #tpu.memory_space<smem>>
    %123 = arith.addi %0, %114 : i32
    %c2_i32_68 = arith.constant 2 : i32
    %124 = arith.addi %123, %c2_i32_68 : i32
    %125 = arith.index_cast %124 : i32 to index
    %126 = memref.load %arg1[%125] : memref<64xi32, #tpu.memory_space<smem>>
    %127 = arith.addi %0, %114 : i32
    %c3_i32_69 = arith.constant 3 : i32
    %128 = arith.addi %127, %c3_i32_69 : i32
    %129 = arith.index_cast %128 : i32 to index
    %130 = memref.load %arg1[%129] : memref<64xi32, #tpu.memory_space<smem>>
    %131 = arith.addi %0, %114 : i32
    %c4_i32_70 = arith.constant 4 : i32
    %132 = arith.addi %131, %c4_i32_70 : i32
    %133 = arith.index_cast %132 : i32 to index
    %134 = memref.load %arg1[%133] : memref<64xi32, #tpu.memory_space<smem>>
    %135 = arith.addi %0, %114 : i32
    %c5_i32_71 = arith.constant 5 : i32
    %136 = arith.addi %135, %c5_i32_71 : i32
    %137 = arith.index_cast %136 : i32 to index
    %138 = memref.load %arg1[%137] : memref<64xi32, #tpu.memory_space<smem>>
    %139 = arith.addi %0, %114 : i32
    %c6_i32_72 = arith.constant 6 : i32
    %140 = arith.addi %139, %c6_i32_72 : i32
    %141 = arith.index_cast %140 : i32 to index
    %142 = memref.load %arg1[%141] : memref<64xi32, #tpu.memory_space<smem>>
    %143 = arith.addi %0, %114 : i32
    %c7_i32_73 = arith.constant 7 : i32
    %144 = arith.addi %143, %c7_i32_73 : i32
    %145 = arith.index_cast %144 : i32 to index
    %146 = memref.load %arg1[%145] : memref<64xi32, #tpu.memory_space<smem>>
    %147 = arith.addi %0, %114 : i32
    %c8_i32_74 = arith.constant 8 : i32
    %148 = arith.addi %147, %c8_i32_74 : i32
    %149 = arith.index_cast %148 : i32 to index
    %150 = memref.load %arg1[%149] : memref<64xi32, #tpu.memory_space<smem>>
    %151 = arith.addi %0, %114 : i32
    %c9_i32_75 = arith.constant 9 : i32
    %152 = arith.addi %151, %c9_i32_75 : i32
    %153 = arith.index_cast %152 : i32 to index
    %154 = memref.load %arg1[%153] : memref<64xi32, #tpu.memory_space<smem>>
    %155 = arith.addi %0, %114 : i32
    %c10_i32_76 = arith.constant 10 : i32
    %156 = arith.addi %155, %c10_i32_76 : i32
    %157 = arith.index_cast %156 : i32 to index
    %158 = memref.load %arg1[%157] : memref<64xi32, #tpu.memory_space<smem>>
    %159 = arith.addi %0, %114 : i32
    %c11_i32_77 = arith.constant 11 : i32
    %160 = arith.addi %159, %c11_i32_77 : i32
    %161 = arith.index_cast %160 : i32 to index
    %162 = memref.load %arg1[%161] : memref<64xi32, #tpu.memory_space<smem>>
    %163 = arith.addi %0, %114 : i32
    %c12_i32_78 = arith.constant 12 : i32
    %164 = arith.addi %163, %c12_i32_78 : i32
    %165 = arith.index_cast %164 : i32 to index
    %166 = memref.load %arg1[%165] : memref<64xi32, #tpu.memory_space<smem>>
    %167 = arith.addi %0, %114 : i32
    %c13_i32_79 = arith.constant 13 : i32
    %168 = arith.addi %167, %c13_i32_79 : i32
    %169 = arith.index_cast %168 : i32 to index
    %170 = memref.load %arg1[%169] : memref<64xi32, #tpu.memory_space<smem>>
    %171 = arith.addi %0, %114 : i32
    %c14_i32_80 = arith.constant 14 : i32
    %172 = arith.addi %171, %c14_i32_80 : i32
    %173 = arith.index_cast %172 : i32 to index
    %174 = memref.load %arg1[%173] : memref<64xi32, #tpu.memory_space<smem>>
    %175 = arith.addi %0, %114 : i32
    %c15_i32_81 = arith.constant 15 : i32
    %176 = arith.addi %175, %c15_i32_81 : i32
    %177 = arith.index_cast %176 : i32 to index
    %178 = memref.load %arg1[%177] : memref<64xi32, #tpu.memory_space<smem>>
    %c0_i32_82 = arith.constant 0 : i32
    %179 = arith.addi %113, %c0_i32_82 : i32
    %c0_i32_83 = arith.constant 0 : i32
    %c0_i32_84 = arith.constant 0 : i32
    %c0_i32_85 = arith.constant 0 : i32
    %180 = tpu.memref_slice %arg2[%c0_i32_84, %c0_i32_85] : memref<1000x384xf32, #tpu.memory_space<any>> -> memref<1x384xf32, #tpu.memory_space<any>>
    %c0_i32_86 = arith.constant 0 : i32
    %181 = tpu.memref_slice %arg3[%179, %c0_i32_86] : memref<32x384xf32, #tpu.memory_space<vmem>> -> memref<1x384xf32, #tpu.memory_space<vmem>>
    %182 = tpu.memref_slice %arg4[%c0_i32_83] : memref<16x!tpu.dma_semaphore, #tpu.memory_space<semaphore_mem>> -> memref<1x!tpu.dma_semaphore, #tpu.memory_space<semaphore_mem>>
    %183 = tpu.memref_squeeze %182 : memref<1x!tpu.dma_semaphore, #tpu.memory_space<semaphore_mem>> -> memref<!tpu.dma_semaphore, #tpu.memory_space<semaphore_mem>>
    tpu.wait_dma2 semaphore(%183 : memref<!tpu.dma_semaphore, #tpu.memory_space<semaphore_mem>>) src(%180 : memref<1x384xf32, #tpu.memory_space<any>>) dst(%181 : memref<1x384xf32, #tpu.memory_space<vmem>>)
    %c0_i32_87 = arith.constant 0 : i32
    %184 = arith.addi %114, %c0_i32_87 : i32
    %c0_i32_88 = arith.constant 0 : i32
    %c0_i32_89 = arith.constant 0 : i32
    %185 = tpu.memref_slice %arg2[%118, %c0_i32_89] : memref<1000x384xf32, #tpu.memory_space<any>> -> memref<1x384xf32, #tpu.memory_space<any>>
    %c0_i32_90 = arith.constant 0 : i32
    %186 = tpu.memref_slice %arg3[%184, %c0_i32_90] : memref<32x384xf32, #tpu.memory_space<vmem>> -> memref<1x384xf32, #tpu.memory_space<vmem>>
    %187 = tpu.memref_slice %arg4[%c0_i32_88] : memref<16x!tpu.dma_semaphore, #tpu.memory_space<semaphore_mem>> -> memref<1x!tpu.dma_semaphore, #tpu.memory_space<semaphore_mem>>
    %188 = tpu.memref_squeeze %187 : memref<1x!tpu.dma_semaphore, #tpu.memory_space<semaphore_mem>> -> memref<!tpu.dma_semaphore, #tpu.memory_space<semaphore_mem>>
    tpu.enqueue_dma source(%185 : memref<1x384xf32, #tpu.memory_space<any>>) target(%186 : memref<1x384xf32, #tpu.memory_space<vmem>>) target_semaphore(%188 : memref<!tpu.dma_semaphore, #tpu.memory_space<semaphore_mem>>)
    %c1_i32_91 = arith.constant 1 : i32
    %189 = arith.addi %113, %c1_i32_91 : i32
    %c1_i32_92 = arith.constant 1 : i32
    %c0_i32_93 = arith.constant 0 : i32
    %c0_i32_94 = arith.constant 0 : i32
    %190 = tpu.memref_slice %arg2[%c0_i32_93, %c0_i32_94] : memref<1000x384xf32, #tpu.memory_space<any>> -> memref<1x384xf32, #tpu.memory_space<any>>
    %c0_i32_95 = arith.constant 0 : i32
    %191 = tpu.memref_slice %arg3[%189, %c0_i32_95] : memref<32x384xf32, #tpu.memory_space<vmem>> -> memref<1x384xf32, #tpu.memory_space<vmem>>
    %192 = tpu.memref_slice %arg4[%c1_i32_92] : memref<16x!tpu.dma_semaphore, #tpu.memory_space<semaphore_mem>> -> memref<1x!tpu.dma_semaphore, #tpu.memory_space<semaphore_mem>>
    %193 = tpu.memref_squeeze %192 : memref<1x!tpu.dma_semaphore, #tpu.memory_space<semaphore_mem>> -> memref<!tpu.dma_semaphore, #tpu.memory_space<semaphore_mem>>
    tpu.wait_dma2 semaphore(%193 : memref<!tpu.dma_semaphore, #tpu.memory_space<semaphore_mem>>) src(%190 : memref<1x384xf32, #tpu.memory_space<any>>) dst(%191 : memref<1x384xf32, #tpu.memory_space<vmem>>)
    %c1_i32_96 = arith.constant 1 : i32
    %194 = arith.addi %114, %c1_i32_96 : i32
    %c1_i32_97 = arith.constant 1 : i32
    %c0_i32_98 = arith.constant 0 : i32
    %195 = tpu.memref_slice %arg2[%122, %c0_i32_98] : memref<1000x384xf32, #tpu.memory_space<any>> -> memref<1x384xf32, #tpu.memory_space<any>>
    %c0_i32_99 = arith.constant 0 : i32
    %196 = tpu.memref_slice %arg3[%194, %c0_i32_99] : memref<32x384xf32, #tpu.memory_space<vmem>> -> memref<1x384xf32, #tpu.memory_space<vmem>>
    %197 = tpu.memref_slice %arg4[%c1_i32_97] : memref<16x!tpu.dma_semaphore, #tpu.memory_space<semaphore_mem>> -> memref<1x!tpu.dma_semaphore, #tpu.memory_space<semaphore_mem>>
    %198 = tpu.memref_squeeze %197 : memref<1x!tpu.dma_semaphore, #tpu.memory_space<semaphore_mem>> -> memref<!tpu.dma_semaphore, #tpu.memory_space<semaphore_mem>>
    tpu.enqueue_dma source(%195 : memref<1x384xf32, #tpu.memory_space<any>>) target(%196 : memref<1x384xf32, #tpu.memory_space<vmem>>) target_semaphore(%198 : memref<!tpu.dma_semaphore, #tpu.memory_space<semaphore_mem>>)
    %c2_i32_100 = arith.constant 2 : i32
    %199 = arith.addi %113, %c2_i32_100 : i32
    %c2_i32_101 = arith.constant 2 : i32
    %c0_i32_102 = arith.constant 0 : i32
    %c0_i32_103 = arith.constant 0 : i32
    %200 = tpu.memref_slice %arg2[%c0_i32_102, %c0_i32_103] : memref<1000x384xf32, #tpu.memory_space<any>> -> memref<1x384xf32, #tpu.memory_space<any>>
    %c0_i32_104 = arith.constant 0 : i32
    %201 = tpu.memref_slice %arg3[%199, %c0_i32_104] : memref<32x384xf32, #tpu.memory_space<vmem>> -> memref<1x384xf32, #tpu.memory_space<vmem>>
    %202 = tpu.memref_slice %arg4[%c2_i32_101] : memref<16x!tpu.dma_semaphore, #tpu.memory_space<semaphore_mem>> -> memref<1x!tpu.dma_semaphore, #tpu.memory_space<semaphore_mem>>
    %203 = tpu.memref_squeeze %202 : memref<1x!tpu.dma_semaphore, #tpu.memory_space<semaphore_mem>> -> memref<!tpu.dma_semaphore, #tpu.memory_space<semaphore_mem>>
    tpu.wait_dma2 semaphore(%203 : memref<!tpu.dma_semaphore, #tpu.memory_space<semaphore_mem>>) src(%200 : memref<1x384xf32, #tpu.memory_space<any>>) dst(%201 : memref<1x384xf32, #tpu.memory_space<vmem>>)
    %c2_i32_105 = arith.constant 2 : i32
    %204 = arith.addi %114, %c2_i32_105 : i32
    %c2_i32_106 = arith.constant 2 : i32
    %c0_i32_107 = arith.constant 0 : i32
    %205 = tpu.memref_slice %arg2[%126, %c0_i32_107] : memref<1000x384xf32, #tpu.memory_space<any>> -> memref<1x384xf32, #tpu.memory_space<any>>
    %c0_i32_108 = arith.constant 0 : i32
    %206 = tpu.memref_slice %arg3[%204, %c0_i32_108] : memref<32x384xf32, #tpu.memory_space<vmem>> -> memref<1x384xf32, #tpu.memory_space<vmem>>
    %207 = tpu.memref_slice %arg4[%c2_i32_106] : memref<16x!tpu.dma_semaphore, #tpu.memory_space<semaphore_mem>> -> memref<1x!tpu.dma_semaphore, #tpu.memory_space<semaphore_mem>>
    %208 = tpu.memref_squeeze %207 : memref<1x!tpu.dma_semaphore, #tpu.memory_space<semaphore_mem>> -> memref<!tpu.dma_semaphore, #tpu.memory_space<semaphore_mem>>
    tpu.enqueue_dma source(%205 : memref<1x384xf32, #tpu.memory_space<any>>) target(%206 : memref<1x384xf32, #tpu.memory_space<vmem>>) target_semaphore(%208 : memref<!tpu.dma_semaphore, #tpu.memory_space<semaphore_mem>>)
    %c3_i32_109 = arith.constant 3 : i32
    %209 = arith.addi %113, %c3_i32_109 : i32
    %c3_i32_110 = arith.constant 3 : i32
    %c0_i32_111 = arith.constant 0 : i32
    %c0_i32_112 = arith.constant 0 : i32
    %210 = tpu.memref_slice %arg2[%c0_i32_111, %c0_i32_112] : memref<1000x384xf32, #tpu.memory_space<any>> -> memref<1x384xf32, #tpu.memory_space<any>>
    %c0_i32_113 = arith.constant 0 : i32
    %211 = tpu.memref_slice %arg3[%209, %c0_i32_113] : memref<32x384xf32, #tpu.memory_space<vmem>> -> memref<1x384xf32, #tpu.memory_space<vmem>>
    %212 = tpu.memref_slice %arg4[%c3_i32_110] : memref<16x!tpu.dma_semaphore, #tpu.memory_space<semaphore_mem>> -> memref<1x!tpu.dma_semaphore, #tpu.memory_space<semaphore_mem>>
    %213 = tpu.memref_squeeze %212 : memref<1x!tpu.dma_semaphore, #tpu.memory_space<semaphore_mem>> -> memref<!tpu.dma_semaphore, #tpu.memory_space<semaphore_mem>>
    tpu.wait_dma2 semaphore(%213 : memref<!tpu.dma_semaphore, #tpu.memory_space<semaphore_mem>>) src(%210 : memref<1x384xf32, #tpu.memory_space<any>>) dst(%211 : memref<1x384xf32, #tpu.memory_space<vmem>>)
    %c3_i32_114 = arith.constant 3 : i32
    %214 = arith.addi %114, %c3_i32_114 : i32
    %c3_i32_115 = arith.constant 3 : i32
    %c0_i32_116 = arith.constant 0 : i32
    %215 = tpu.memref_slice %arg2[%130, %c0_i32_116] : memref<1000x384xf32, #tpu.memory_space<any>> -> memref<1x384xf32, #tpu.memory_space<any>>
    %c0_i32_117 = arith.constant 0 : i32
    %216 = tpu.memref_slice %arg3[%214, %c0_i32_117] : memref<32x384xf32, #tpu.memory_space<vmem>> -> memref<1x384xf32, #tpu.memory_space<vmem>>
    %217 = tpu.memref_slice %arg4[%c3_i32_115] : memref<16x!tpu.dma_semaphore, #tpu.memory_space<semaphore_mem>> -> memref<1x!tpu.dma_semaphore, #tpu.memory_space<semaphore_mem>>
    %218 = tpu.memref_squeeze %217 : memref<1x!tpu.dma_semaphore, #tpu.memory_space<semaphore_mem>> -> memref<!tpu.dma_semaphore, #tpu.memory_space<semaphore_mem>>
    tpu.enqueue_dma source(%215 : memref<1x384xf32, #tpu.memory_space<any>>) target(%216 : memref<1x384xf32, #tpu.memory_space<vmem>>) target_semaphore(%218 : memref<!tpu.dma_semaphore, #tpu.memory_space<semaphore_mem>>)
    %c4_i32_118 = arith.constant 4 : i32
    %219 = arith.addi %113, %c4_i32_118 : i32
    %c4_i32_119 = arith.constant 4 : i32
    %c0_i32_120 = arith.constant 0 : i32
    %c0_i32_121 = arith.constant 0 : i32
    %220 = tpu.memref_slice %arg2[%c0_i32_120, %c0_i32_121] : memref<1000x384xf32, #tpu.memory_space<any>> -> memref<1x384xf32, #tpu.memory_space<any>>
    %c0_i32_122 = arith.constant 0 : i32
    %221 = tpu.memref_slice %arg3[%219, %c0_i32_122] : memref<32x384xf32, #tpu.memory_space<vmem>> -> memref<1x384xf32, #tpu.memory_space<vmem>>
    %222 = tpu.memref_slice %arg4[%c4_i32_119] : memref<16x!tpu.dma_semaphore, #tpu.memory_space<semaphore_mem>> -> memref<1x!tpu.dma_semaphore, #tpu.memory_space<semaphore_mem>>
    %223 = tpu.memref_squeeze %222 : memref<1x!tpu.dma_semaphore, #tpu.memory_space<semaphore_mem>> -> memref<!tpu.dma_semaphore, #tpu.memory_space<semaphore_mem>>
    tpu.wait_dma2 semaphore(%223 : memref<!tpu.dma_semaphore, #tpu.memory_space<semaphore_mem>>) src(%220 : memref<1x384xf32, #tpu.memory_space<any>>) dst(%221 : memref<1x384xf32, #tpu.memory_space<vmem>>)
    %c4_i32_123 = arith.constant 4 : i32
    %224 = arith.addi %114, %c4_i32_123 : i32
    %c4_i32_124 = arith.constant 4 : i32
    %c0_i32_125 = arith.constant 0 : i32
    %225 = tpu.memref_slice %arg2[%134, %c0_i32_125] : memref<1000x384xf32, #tpu.memory_space<any>> -> memref<1x384xf32, #tpu.memory_space<any>>
    %c0_i32_126 = arith.constant 0 : i32
    %226 = tpu.memref_slice %arg3[%224, %c0_i32_126] : memref<32x384xf32, #tpu.memory_space<vmem>> -> memref<1x384xf32, #tpu.memory_space<vmem>>
    %227 = tpu.memref_slice %arg4[%c4_i32_124] : memref<16x!tpu.dma_semaphore, #tpu.memory_space<semaphore_mem>> -> memref<1x!tpu.dma_semaphore, #tpu.memory_space<semaphore_mem>>
    %228 = tpu.memref_squeeze %227 : memref<1x!tpu.dma_semaphore, #tpu.memory_space<semaphore_mem>> -> memref<!tpu.dma_semaphore, #tpu.memory_space<semaphore_mem>>
    tpu.enqueue_dma source(%225 : memref<1x384xf32, #tpu.memory_space<any>>) target(%226 : memref<1x384xf32, #tpu.memory_space<vmem>>) target_semaphore(%228 : memref<!tpu.dma_semaphore, #tpu.memory_space<semaphore_mem>>)
    %c5_i32_127 = arith.constant 5 : i32
    %229 = arith.addi %113, %c5_i32_127 : i32
    %c5_i32_128 = arith.constant 5 : i32
    %c0_i32_129 = arith.constant 0 : i32
    %c0_i32_130 = arith.constant 0 : i32
    %230 = tpu.memref_slice %arg2[%c0_i32_129, %c0_i32_130] : memref<1000x384xf32, #tpu.memory_space<any>> -> memref<1x384xf32, #tpu.memory_space<any>>
    %c0_i32_131 = arith.constant 0 : i32
    %231 = tpu.memref_slice %arg3[%229, %c0_i32_131] : memref<32x384xf32, #tpu.memory_space<vmem>> -> memref<1x384xf32, #tpu.memory_space<vmem>>
    %232 = tpu.memref_slice %arg4[%c5_i32_128] : memref<16x!tpu.dma_semaphore, #tpu.memory_space<semaphore_mem>> -> memref<1x!tpu.dma_semaphore, #tpu.memory_space<semaphore_mem>>
    %233 = tpu.memref_squeeze %232 : memref<1x!tpu.dma_semaphore, #tpu.memory_space<semaphore_mem>> -> memref<!tpu.dma_semaphore, #tpu.memory_space<semaphore_mem>>
    tpu.wait_dma2 semaphore(%233 : memref<!tpu.dma_semaphore, #tpu.memory_space<semaphore_mem>>) src(%230 : memref<1x384xf32, #tpu.memory_space<any>>) dst(%231 : memref<1x384xf32, #tpu.memory_space<vmem>>)
    %c5_i32_132 = arith.constant 5 : i32
    %234 = arith.addi %114, %c5_i32_132 : i32
    %c5_i32_133 = arith.constant 5 : i32
    %c0_i32_134 = arith.constant 0 : i32
    %235 = tpu.memref_slice %arg2[%138, %c0_i32_134] : memref<1000x384xf32, #tpu.memory_space<any>> -> memref<1x384xf32, #tpu.memory_space<any>>
    %c0_i32_135 = arith.constant 0 : i32
    %236 = tpu.memref_slice %arg3[%234, %c0_i32_135] : memref<32x384xf32, #tpu.memory_space<vmem>> -> memref<1x384xf32, #tpu.memory_space<vmem>>
    %237 = tpu.memref_slice %arg4[%c5_i32_133] : memref<16x!tpu.dma_semaphore, #tpu.memory_space<semaphore_mem>> -> memref<1x!tpu.dma_semaphore, #tpu.memory_space<semaphore_mem>>
    %238 = tpu.memref_squeeze %237 : memref<1x!tpu.dma_semaphore, #tpu.memory_space<semaphore_mem>> -> memref<!tpu.dma_semaphore, #tpu.memory_space<semaphore_mem>>
    tpu.enqueue_dma source(%235 : memref<1x384xf32, #tpu.memory_space<any>>) target(%236 : memref<1x384xf32, #tpu.memory_space<vmem>>) target_semaphore(%238 : memref<!tpu.dma_semaphore, #tpu.memory_space<semaphore_mem>>)
    %c6_i32_136 = arith.constant 6 : i32
    %239 = arith.addi %113, %c6_i32_136 : i32
    %c6_i32_137 = arith.constant 6 : i32
    %c0_i32_138 = arith.constant 0 : i32
    %c0_i32_139 = arith.constant 0 : i32
    %240 = tpu.memref_slice %arg2[%c0_i32_138, %c0_i32_139] : memref<1000x384xf32, #tpu.memory_space<any>> -> memref<1x384xf32, #tpu.memory_space<any>>
    %c0_i32_140 = arith.constant 0 : i32
    %241 = tpu.memref_slice %arg3[%239, %c0_i32_140] : memref<32x384xf32, #tpu.memory_space<vmem>> -> memref<1x384xf32, #tpu.memory_space<vmem>>
    %242 = tpu.memref_slice %arg4[%c6_i32_137] : memref<16x!tpu.dma_semaphore, #tpu.memory_space<semaphore_mem>> -> memref<1x!tpu.dma_semaphore, #tpu.memory_space<semaphore_mem>>
    %243 = tpu.memref_squeeze %242 : memref<1x!tpu.dma_semaphore, #tpu.memory_space<semaphore_mem>> -> memref<!tpu.dma_semaphore, #tpu.memory_space<semaphore_mem>>
    tpu.wait_dma2 semaphore(%243 : memref<!tpu.dma_semaphore, #tpu.memory_space<semaphore_mem>>) src(%240 : memref<1x384xf32, #tpu.memory_space<any>>) dst(%241 : memref<1x384xf32, #tpu.memory_space<vmem>>)
    %c6_i32_141 = arith.constant 6 : i32
    %244 = arith.addi %114, %c6_i32_141 : i32
    %c6_i32_142 = arith.constant 6 : i32
    %c0_i32_143 = arith.constant 0 : i32
    %245 = tpu.memref_slice %arg2[%142, %c0_i32_143] : memref<1000x384xf32, #tpu.memory_space<any>> -> memref<1x384xf32, #tpu.memory_space<any>>
    %c0_i32_144 = arith.constant 0 : i32
    %246 = tpu.memref_slice %arg3[%244, %c0_i32_144] : memref<32x384xf32, #tpu.memory_space<vmem>> -> memref<1x384xf32, #tpu.memory_space<vmem>>
    %247 = tpu.memref_slice %arg4[%c6_i32_142] : memref<16x!tpu.dma_semaphore, #tpu.memory_space<semaphore_mem>> -> memref<1x!tpu.dma_semaphore, #tpu.memory_space<semaphore_mem>>
    %248 = tpu.memref_squeeze %247 : memref<1x!tpu.dma_semaphore, #tpu.memory_space<semaphore_mem>> -> memref<!tpu.dma_semaphore, #tpu.memory_space<semaphore_mem>>
    tpu.enqueue_dma source(%245 : memref<1x384xf32, #tpu.memory_space<any>>) target(%246 : memref<1x384xf32, #tpu.memory_space<vmem>>) target_semaphore(%248 : memref<!tpu.dma_semaphore, #tpu.memory_space<semaphore_mem>>)
    %c7_i32_145 = arith.constant 7 : i32
    %249 = arith.addi %113, %c7_i32_145 : i32
    %c7_i32_146 = arith.constant 7 : i32
    %c0_i32_147 = arith.constant 0 : i32
    %c0_i32_148 = arith.constant 0 : i32
    %250 = tpu.memref_slice %arg2[%c0_i32_147, %c0_i32_148] : memref<1000x384xf32, #tpu.memory_space<any>> -> memref<1x384xf32, #tpu.memory_space<any>>
    %c0_i32_149 = arith.constant 0 : i32
    %251 = tpu.memref_slice %arg3[%249, %c0_i32_149] : memref<32x384xf32, #tpu.memory_space<vmem>> -> memref<1x384xf32, #tpu.memory_space<vmem>>
    %252 = tpu.memref_slice %arg4[%c7_i32_146] : memref<16x!tpu.dma_semaphore, #tpu.memory_space<semaphore_mem>> -> memref<1x!tpu.dma_semaphore, #tpu.memory_space<semaphore_mem>>
    %253 = tpu.memref_squeeze %252 : memref<1x!tpu.dma_semaphore, #tpu.memory_space<semaphore_mem>> -> memref<!tpu.dma_semaphore, #tpu.memory_space<semaphore_mem>>
    tpu.wait_dma2 semaphore(%253 : memref<!tpu.dma_semaphore, #tpu.memory_space<semaphore_mem>>) src(%250 : memref<1x384xf32, #tpu.memory_space<any>>) dst(%251 : memref<1x384xf32, #tpu.memory_space<vmem>>)
    %c7_i32_150 = arith.constant 7 : i32
    %254 = arith.addi %114, %c7_i32_150 : i32
    %c7_i32_151 = arith.constant 7 : i32
    %c0_i32_152 = arith.constant 0 : i32
    %255 = tpu.memref_slice %arg2[%146, %c0_i32_152] : memref<1000x384xf32, #tpu.memory_space<any>> -> memref<1x384xf32, #tpu.memory_space<any>>
    %c0_i32_153 = arith.constant 0 : i32
    %256 = tpu.memref_slice %arg3[%254, %c0_i32_153] : memref<32x384xf32, #tpu.memory_space<vmem>> -> memref<1x384xf32, #tpu.memory_space<vmem>>
    %257 = tpu.memref_slice %arg4[%c7_i32_151] : memref<16x!tpu.dma_semaphore, #tpu.memory_space<semaphore_mem>> -> memref<1x!tpu.dma_semaphore, #tpu.memory_space<semaphore_mem>>
    %258 = tpu.memref_squeeze %257 : memref<1x!tpu.dma_semaphore, #tpu.memory_space<semaphore_mem>> -> memref<!tpu.dma_semaphore, #tpu.memory_space<semaphore_mem>>
    tpu.enqueue_dma source(%255 : memref<1x384xf32, #tpu.memory_space<any>>) target(%256 : memref<1x384xf32, #tpu.memory_space<vmem>>) target_semaphore(%258 : memref<!tpu.dma_semaphore, #tpu.memory_space<semaphore_mem>>)
    %c8_i32_154 = arith.constant 8 : i32
    %259 = arith.addi %113, %c8_i32_154 : i32
    %c8_i32_155 = arith.constant 8 : i32
    %c0_i32_156 = arith.constant 0 : i32
    %c0_i32_157 = arith.constant 0 : i32
    %260 = tpu.memref_slice %arg2[%c0_i32_156, %c0_i32_157] : memref<1000x384xf32, #tpu.memory_space<any>> -> memref<1x384xf32, #tpu.memory_space<any>>
    %c0_i32_158 = arith.constant 0 : i32
    %261 = tpu.memref_slice %arg3[%259, %c0_i32_158] : memref<32x384xf32, #tpu.memory_space<vmem>> -> memref<1x384xf32, #tpu.memory_space<vmem>>
    %262 = tpu.memref_slice %arg4[%c8_i32_155] : memref<16x!tpu.dma_semaphore, #tpu.memory_space<semaphore_mem>> -> memref<1x!tpu.dma_semaphore, #tpu.memory_space<semaphore_mem>>
    %263 = tpu.memref_squeeze %262 : memref<1x!tpu.dma_semaphore, #tpu.memory_space<semaphore_mem>> -> memref<!tpu.dma_semaphore, #tpu.memory_space<semaphore_mem>>
    tpu.wait_dma2 semaphore(%263 : memref<!tpu.dma_semaphore, #tpu.memory_space<semaphore_mem>>) src(%260 : memref<1x384xf32, #tpu.memory_space<any>>) dst(%261 : memref<1x384xf32, #tpu.memory_space<vmem>>)
    %c8_i32_159 = arith.constant 8 : i32
    %264 = arith.addi %114, %c8_i32_159 : i32
    %c8_i32_160 = arith.constant 8 : i32
    %c0_i32_161 = arith.constant 0 : i32
    %265 = tpu.memref_slice %arg2[%150, %c0_i32_161] : memref<1000x384xf32, #tpu.memory_space<any>> -> memref<1x384xf32, #tpu.memory_space<any>>
    %c0_i32_162 = arith.constant 0 : i32
    %266 = tpu.memref_slice %arg3[%264, %c0_i32_162] : memref<32x384xf32, #tpu.memory_space<vmem>> -> memref<1x384xf32, #tpu.memory_space<vmem>>
    %267 = tpu.memref_slice %arg4[%c8_i32_160] : memref<16x!tpu.dma_semaphore, #tpu.memory_space<semaphore_mem>> -> memref<1x!tpu.dma_semaphore, #tpu.memory_space<semaphore_mem>>
    %268 = tpu.memref_squeeze %267 : memref<1x!tpu.dma_semaphore, #tpu.memory_space<semaphore_mem>> -> memref<!tpu.dma_semaphore, #tpu.memory_space<semaphore_mem>>
    tpu.enqueue_dma source(%265 : memref<1x384xf32, #tpu.memory_space<any>>) target(%266 : memref<1x384xf32, #tpu.memory_space<vmem>>) target_semaphore(%268 : memref<!tpu.dma_semaphore, #tpu.memory_space<semaphore_mem>>)
    %c9_i32_163 = arith.constant 9 : i32
    %269 = arith.addi %113, %c9_i32_163 : i32
    %c9_i32_164 = arith.constant 9 : i32
    %c0_i32_165 = arith.constant 0 : i32
    %c0_i32_166 = arith.constant 0 : i32
    %270 = tpu.memref_slice %arg2[%c0_i32_165, %c0_i32_166] : memref<1000x384xf32, #tpu.memory_space<any>> -> memref<1x384xf32, #tpu.memory_space<any>>
    %c0_i32_167 = arith.constant 0 : i32
    %271 = tpu.memref_slice %arg3[%269, %c0_i32_167] : memref<32x384xf32, #tpu.memory_space<vmem>> -> memref<1x384xf32, #tpu.memory_space<vmem>>
    %272 = tpu.memref_slice %arg4[%c9_i32_164] : memref<16x!tpu.dma_semaphore, #tpu.memory_space<semaphore_mem>> -> memref<1x!tpu.dma_semaphore, #tpu.memory_space<semaphore_mem>>
    %273 = tpu.memref_squeeze %272 : memref<1x!tpu.dma_semaphore, #tpu.memory_space<semaphore_mem>> -> memref<!tpu.dma_semaphore, #tpu.memory_space<semaphore_mem>>
    tpu.wait_dma2 semaphore(%273 : memref<!tpu.dma_semaphore, #tpu.memory_space<semaphore_mem>>) src(%270 : memref<1x384xf32, #tpu.memory_space<any>>) dst(%271 : memref<1x384xf32, #tpu.memory_space<vmem>>)
    %c9_i32_168 = arith.constant 9 : i32
    %274 = arith.addi %114, %c9_i32_168 : i32
    %c9_i32_169 = arith.constant 9 : i32
    %c0_i32_170 = arith.constant 0 : i32
    %275 = tpu.memref_slice %arg2[%154, %c0_i32_170] : memref<1000x384xf32, #tpu.memory_space<any>> -> memref<1x384xf32, #tpu.memory_space<any>>
    %c0_i32_171 = arith.constant 0 : i32
    %276 = tpu.memref_slice %arg3[%274, %c0_i32_171] : memref<32x384xf32, #tpu.memory_space<vmem>> -> memref<1x384xf32, #tpu.memory_space<vmem>>
    %277 = tpu.memref_slice %arg4[%c9_i32_169] : memref<16x!tpu.dma_semaphore, #tpu.memory_space<semaphore_mem>> -> memref<1x!tpu.dma_semaphore, #tpu.memory_space<semaphore_mem>>
    %278 = tpu.memref_squeeze %277 : memref<1x!tpu.dma_semaphore, #tpu.memory_space<semaphore_mem>> -> memref<!tpu.dma_semaphore, #tpu.memory_space<semaphore_mem>>
    tpu.enqueue_dma source(%275 : memref<1x384xf32, #tpu.memory_space<any>>) target(%276 : memref<1x384xf32, #tpu.memory_space<vmem>>) target_semaphore(%278 : memref<!tpu.dma_semaphore, #tpu.memory_space<semaphore_mem>>)
    %c10_i32_172 = arith.constant 10 : i32
    %279 = arith.addi %113, %c10_i32_172 : i32
    %c10_i32_173 = arith.constant 10 : i32
    %c0_i32_174 = arith.constant 0 : i32
    %c0_i32_175 = arith.constant 0 : i32
    %280 = tpu.memref_slice %arg2[%c0_i32_174, %c0_i32_175] : memref<1000x384xf32, #tpu.memory_space<any>> -> memref<1x384xf32, #tpu.memory_space<any>>
    %c0_i32_176 = arith.constant 0 : i32
    %281 = tpu.memref_slice %arg3[%279, %c0_i32_176] : memref<32x384xf32, #tpu.memory_space<vmem>> -> memref<1x384xf32, #tpu.memory_space<vmem>>
    %282 = tpu.memref_slice %arg4[%c10_i32_173] : memref<16x!tpu.dma_semaphore, #tpu.memory_space<semaphore_mem>> -> memref<1x!tpu.dma_semaphore, #tpu.memory_space<semaphore_mem>>
    %283 = tpu.memref_squeeze %282 : memref<1x!tpu.dma_semaphore, #tpu.memory_space<semaphore_mem>> -> memref<!tpu.dma_semaphore, #tpu.memory_space<semaphore_mem>>
    tpu.wait_dma2 semaphore(%283 : memref<!tpu.dma_semaphore, #tpu.memory_space<semaphore_mem>>) src(%280 : memref<1x384xf32, #tpu.memory_space<any>>) dst(%281 : memref<1x384xf32, #tpu.memory_space<vmem>>)
    %c10_i32_177 = arith.constant 10 : i32
    %284 = arith.addi %114, %c10_i32_177 : i32
    %c10_i32_178 = arith.constant 10 : i32
    %c0_i32_179 = arith.constant 0 : i32
    %285 = tpu.memref_slice %arg2[%158, %c0_i32_179] : memref<1000x384xf32, #tpu.memory_space<any>> -> memref<1x384xf32, #tpu.memory_space<any>>
    %c0_i32_180 = arith.constant 0 : i32
    %286 = tpu.memref_slice %arg3[%284, %c0_i32_180] : memref<32x384xf32, #tpu.memory_space<vmem>> -> memref<1x384xf32, #tpu.memory_space<vmem>>
    %287 = tpu.memref_slice %arg4[%c10_i32_178] : memref<16x!tpu.dma_semaphore, #tpu.memory_space<semaphore_mem>> -> memref<1x!tpu.dma_semaphore, #tpu.memory_space<semaphore_mem>>
    %288 = tpu.memref_squeeze %287 : memref<1x!tpu.dma_semaphore, #tpu.memory_space<semaphore_mem>> -> memref<!tpu.dma_semaphore, #tpu.memory_space<semaphore_mem>>
    tpu.enqueue_dma source(%285 : memref<1x384xf32, #tpu.memory_space<any>>) target(%286 : memref<1x384xf32, #tpu.memory_space<vmem>>) target_semaphore(%288 : memref<!tpu.dma_semaphore, #tpu.memory_space<semaphore_mem>>)
    %c11_i32_181 = arith.constant 11 : i32
    %289 = arith.addi %113, %c11_i32_181 : i32
    %c11_i32_182 = arith.constant 11 : i32
    %c0_i32_183 = arith.constant 0 : i32
    %c0_i32_184 = arith.constant 0 : i32
    %290 = tpu.memref_slice %arg2[%c0_i32_183, %c0_i32_184] : memref<1000x384xf32, #tpu.memory_space<any>> -> memref<1x384xf32, #tpu.memory_space<any>>
    %c0_i32_185 = arith.constant 0 : i32
    %291 = tpu.memref_slice %arg3[%289, %c0_i32_185] : memref<32x384xf32, #tpu.memory_space<vmem>> -> memref<1x384xf32, #tpu.memory_space<vmem>>
    %292 = tpu.memref_slice %arg4[%c11_i32_182] : memref<16x!tpu.dma_semaphore, #tpu.memory_space<semaphore_mem>> -> memref<1x!tpu.dma_semaphore, #tpu.memory_space<semaphore_mem>>
    %293 = tpu.memref_squeeze %292 : memref<1x!tpu.dma_semaphore, #tpu.memory_space<semaphore_mem>> -> memref<!tpu.dma_semaphore, #tpu.memory_space<semaphore_mem>>
    tpu.wait_dma2 semaphore(%293 : memref<!tpu.dma_semaphore, #tpu.memory_space<semaphore_mem>>) src(%290 : memref<1x384xf32, #tpu.memory_space<any>>) dst(%291 : memref<1x384xf32, #tpu.memory_space<vmem>>)
    %c11_i32_186 = arith.constant 11 : i32
    %294 = arith.addi %114, %c11_i32_186 : i32
    %c11_i32_187 = arith.constant 11 : i32
    %c0_i32_188 = arith.constant 0 : i32
    %295 = tpu.memref_slice %arg2[%162, %c0_i32_188] : memref<1000x384xf32, #tpu.memory_space<any>> -> memref<1x384xf32, #tpu.memory_space<any>>
    %c0_i32_189 = arith.constant 0 : i32
    %296 = tpu.memref_slice %arg3[%294, %c0_i32_189] : memref<32x384xf32, #tpu.memory_space<vmem>> -> memref<1x384xf32, #tpu.memory_space<vmem>>
    %297 = tpu.memref_slice %arg4[%c11_i32_187] : memref<16x!tpu.dma_semaphore, #tpu.memory_space<semaphore_mem>> -> memref<1x!tpu.dma_semaphore, #tpu.memory_space<semaphore_mem>>
    %298 = tpu.memref_squeeze %297 : memref<1x!tpu.dma_semaphore, #tpu.memory_space<semaphore_mem>> -> memref<!tpu.dma_semaphore, #tpu.memory_space<semaphore_mem>>
    tpu.enqueue_dma source(%295 : memref<1x384xf32, #tpu.memory_space<any>>) target(%296 : memref<1x384xf32, #tpu.memory_space<vmem>>) target_semaphore(%298 : memref<!tpu.dma_semaphore, #tpu.memory_space<semaphore_mem>>)
    %c12_i32_190 = arith.constant 12 : i32
    %299 = arith.addi %113, %c12_i32_190 : i32
    %c12_i32_191 = arith.constant 12 : i32
    %c0_i32_192 = arith.constant 0 : i32
    %c0_i32_193 = arith.constant 0 : i32
    %300 = tpu.memref_slice %arg2[%c0_i32_192, %c0_i32_193] : memref<1000x384xf32, #tpu.memory_space<any>> -> memref<1x384xf32, #tpu.memory_space<any>>
    %c0_i32_194 = arith.constant 0 : i32
    %301 = tpu.memref_slice %arg3[%299, %c0_i32_194] : memref<32x384xf32, #tpu.memory_space<vmem>> -> memref<1x384xf32, #tpu.memory_space<vmem>>
    %302 = tpu.memref_slice %arg4[%c12_i32_191] : memref<16x!tpu.dma_semaphore, #tpu.memory_space<semaphore_mem>> -> memref<1x!tpu.dma_semaphore, #tpu.memory_space<semaphore_mem>>
    %303 = tpu.memref_squeeze %302 : memref<1x!tpu.dma_semaphore, #tpu.memory_space<semaphore_mem>> -> memref<!tpu.dma_semaphore, #tpu.memory_space<semaphore_mem>>
    tpu.wait_dma2 semaphore(%303 : memref<!tpu.dma_semaphore, #tpu.memory_space<semaphore_mem>>) src(%300 : memref<1x384xf32, #tpu.memory_space<any>>) dst(%301 : memref<1x384xf32, #tpu.memory_space<vmem>>)
    %c12_i32_195 = arith.constant 12 : i32
    %304 = arith.addi %114, %c12_i32_195 : i32
    %c12_i32_196 = arith.constant 12 : i32
    %c0_i32_197 = arith.constant 0 : i32
    %305 = tpu.memref_slice %arg2[%166, %c0_i32_197] : memref<1000x384xf32, #tpu.memory_space<any>> -> memref<1x384xf32, #tpu.memory_space<any>>
    %c0_i32_198 = arith.constant 0 : i32
    %306 = tpu.memref_slice %arg3[%304, %c0_i32_198] : memref<32x384xf32, #tpu.memory_space<vmem>> -> memref<1x384xf32, #tpu.memory_space<vmem>>
    %307 = tpu.memref_slice %arg4[%c12_i32_196] : memref<16x!tpu.dma_semaphore, #tpu.memory_space<semaphore_mem>> -> memref<1x!tpu.dma_semaphore, #tpu.memory_space<semaphore_mem>>
    %308 = tpu.memref_squeeze %307 : memref<1x!tpu.dma_semaphore, #tpu.memory_space<semaphore_mem>> -> memref<!tpu.dma_semaphore, #tpu.memory_space<semaphore_mem>>
    tpu.enqueue_dma source(%305 : memref<1x384xf32, #tpu.memory_space<any>>) target(%306 : memref<1x384xf32, #tpu.memory_space<vmem>>) target_semaphore(%308 : memref<!tpu.dma_semaphore, #tpu.memory_space<semaphore_mem>>)
    %c13_i32_199 = arith.constant 13 : i32
    %309 = arith.addi %113, %c13_i32_199 : i32
    %c13_i32_200 = arith.constant 13 : i32
    %c0_i32_201 = arith.constant 0 : i32
    %c0_i32_202 = arith.constant 0 : i32
    %310 = tpu.memref_slice %arg2[%c0_i32_201, %c0_i32_202] : memref<1000x384xf32, #tpu.memory_space<any>> -> memref<1x384xf32, #tpu.memory_space<any>>
    %c0_i32_203 = arith.constant 0 : i32
    %311 = tpu.memref_slice %arg3[%309, %c0_i32_203] : memref<32x384xf32, #tpu.memory_space<vmem>> -> memref<1x384xf32, #tpu.memory_space<vmem>>
    %312 = tpu.memref_slice %arg4[%c13_i32_200] : memref<16x!tpu.dma_semaphore, #tpu.memory_space<semaphore_mem>> -> memref<1x!tpu.dma_semaphore, #tpu.memory_space<semaphore_mem>>
    %313 = tpu.memref_squeeze %312 : memref<1x!tpu.dma_semaphore, #tpu.memory_space<semaphore_mem>> -> memref<!tpu.dma_semaphore, #tpu.memory_space<semaphore_mem>>
    tpu.wait_dma2 semaphore(%313 : memref<!tpu.dma_semaphore, #tpu.memory_space<semaphore_mem>>) src(%310 : memref<1x384xf32, #tpu.memory_space<any>>) dst(%311 : memref<1x384xf32, #tpu.memory_space<vmem>>)
    %c13_i32_204 = arith.constant 13 : i32
    %314 = arith.addi %114, %c13_i32_204 : i32
    %c13_i32_205 = arith.constant 13 : i32
    %c0_i32_206 = arith.constant 0 : i32
    %315 = tpu.memref_slice %arg2[%170, %c0_i32_206] : memref<1000x384xf32, #tpu.memory_space<any>> -> memref<1x384xf32, #tpu.memory_space<any>>
    %c0_i32_207 = arith.constant 0 : i32
    %316 = tpu.memref_slice %arg3[%314, %c0_i32_207] : memref<32x384xf32, #tpu.memory_space<vmem>> -> memref<1x384xf32, #tpu.memory_space<vmem>>
    %317 = tpu.memref_slice %arg4[%c13_i32_205] : memref<16x!tpu.dma_semaphore, #tpu.memory_space<semaphore_mem>> -> memref<1x!tpu.dma_semaphore, #tpu.memory_space<semaphore_mem>>
    %318 = tpu.memref_squeeze %317 : memref<1x!tpu.dma_semaphore, #tpu.memory_space<semaphore_mem>> -> memref<!tpu.dma_semaphore, #tpu.memory_space<semaphore_mem>>
    tpu.enqueue_dma source(%315 : memref<1x384xf32, #tpu.memory_space<any>>) target(%316 : memref<1x384xf32, #tpu.memory_space<vmem>>) target_semaphore(%318 : memref<!tpu.dma_semaphore, #tpu.memory_space<semaphore_mem>>)
    %c14_i32_208 = arith.constant 14 : i32
    %319 = arith.addi %113, %c14_i32_208 : i32
    %c14_i32_209 = arith.constant 14 : i32
    %c0_i32_210 = arith.constant 0 : i32
    %c0_i32_211 = arith.constant 0 : i32
    %320 = tpu.memref_slice %arg2[%c0_i32_210, %c0_i32_211] : memref<1000x384xf32, #tpu.memory_space<any>> -> memref<1x384xf32, #tpu.memory_space<any>>
    %c0_i32_212 = arith.constant 0 : i32
    %321 = tpu.memref_slice %arg3[%319, %c0_i32_212] : memref<32x384xf32, #tpu.memory_space<vmem>> -> memref<1x384xf32, #tpu.memory_space<vmem>>
    %322 = tpu.memref_slice %arg4[%c14_i32_209] : memref<16x!tpu.dma_semaphore, #tpu.memory_space<semaphore_mem>> -> memref<1x!tpu.dma_semaphore, #tpu.memory_space<semaphore_mem>>
    %323 = tpu.memref_squeeze %322 : memref<1x!tpu.dma_semaphore, #tpu.memory_space<semaphore_mem>> -> memref<!tpu.dma_semaphore, #tpu.memory_space<semaphore_mem>>
    tpu.wait_dma2 semaphore(%323 : memref<!tpu.dma_semaphore, #tpu.memory_space<semaphore_mem>>) src(%320 : memref<1x384xf32, #tpu.memory_space<any>>) dst(%321 : memref<1x384xf32, #tpu.memory_space<vmem>>)
    %c14_i32_213 = arith.constant 14 : i32
    %324 = arith.addi %114, %c14_i32_213 : i32
    %c14_i32_214 = arith.constant 14 : i32
    %c0_i32_215 = arith.constant 0 : i32
    %325 = tpu.memref_slice %arg2[%174, %c0_i32_215] : memref<1000x384xf32, #tpu.memory_space<any>> -> memref<1x384xf32, #tpu.memory_space<any>>
    %c0_i32_216 = arith.constant 0 : i32
    %326 = tpu.memref_slice %arg3[%324, %c0_i32_216] : memref<32x384xf32, #tpu.memory_space<vmem>> -> memref<1x384xf32, #tpu.memory_space<vmem>>
    %327 = tpu.memref_slice %arg4[%c14_i32_214] : memref<16x!tpu.dma_semaphore, #tpu.memory_space<semaphore_mem>> -> memref<1x!tpu.dma_semaphore, #tpu.memory_space<semaphore_mem>>
    %328 = tpu.memref_squeeze %327 : memref<1x!tpu.dma_semaphore, #tpu.memory_space<semaphore_mem>> -> memref<!tpu.dma_semaphore, #tpu.memory_space<semaphore_mem>>
    tpu.enqueue_dma source(%325 : memref<1x384xf32, #tpu.memory_space<any>>) target(%326 : memref<1x384xf32, #tpu.memory_space<vmem>>) target_semaphore(%328 : memref<!tpu.dma_semaphore, #tpu.memory_space<semaphore_mem>>)
    %c15_i32_217 = arith.constant 15 : i32
    %329 = arith.addi %113, %c15_i32_217 : i32
    %c15_i32_218 = arith.constant 15 : i32
    %c0_i32_219 = arith.constant 0 : i32
    %c0_i32_220 = arith.constant 0 : i32
    %330 = tpu.memref_slice %arg2[%c0_i32_219, %c0_i32_220] : memref<1000x384xf32, #tpu.memory_space<any>> -> memref<1x384xf32, #tpu.memory_space<any>>
    %c0_i32_221 = arith.constant 0 : i32
    %331 = tpu.memref_slice %arg3[%329, %c0_i32_221] : memref<32x384xf32, #tpu.memory_space<vmem>> -> memref<1x384xf32, #tpu.memory_space<vmem>>
    %332 = tpu.memref_slice %arg4[%c15_i32_218] : memref<16x!tpu.dma_semaphore, #tpu.memory_space<semaphore_mem>> -> memref<1x!tpu.dma_semaphore, #tpu.memory_space<semaphore_mem>>
    %333 = tpu.memref_squeeze %332 : memref<1x!tpu.dma_semaphore, #tpu.memory_space<semaphore_mem>> -> memref<!tpu.dma_semaphore, #tpu.memory_space<semaphore_mem>>
    tpu.wait_dma2 semaphore(%333 : memref<!tpu.dma_semaphore, #tpu.memory_space<semaphore_mem>>) src(%330 : memref<1x384xf32, #tpu.memory_space<any>>) dst(%331 : memref<1x384xf32, #tpu.memory_space<vmem>>)
    %c15_i32_222 = arith.constant 15 : i32
    %334 = arith.addi %114, %c15_i32_222 : i32
    %c15_i32_223 = arith.constant 15 : i32
    %c0_i32_224 = arith.constant 0 : i32
    %335 = tpu.memref_slice %arg2[%178, %c0_i32_224] : memref<1000x384xf32, #tpu.memory_space<any>> -> memref<1x384xf32, #tpu.memory_space<any>>
    %c0_i32_225 = arith.constant 0 : i32
    %336 = tpu.memref_slice %arg3[%334, %c0_i32_225] : memref<32x384xf32, #tpu.memory_space<vmem>> -> memref<1x384xf32, #tpu.memory_space<vmem>>
    %337 = tpu.memref_slice %arg4[%c15_i32_223] : memref<16x!tpu.dma_semaphore, #tpu.memory_space<semaphore_mem>> -> memref<1x!tpu.dma_semaphore, #tpu.memory_space<semaphore_mem>>
    %338 = tpu.memref_squeeze %337 : memref<1x!tpu.dma_semaphore, #tpu.memory_space<semaphore_mem>> -> memref<!tpu.dma_semaphore, #tpu.memory_space<semaphore_mem>>
    tpu.enqueue_dma source(%335 : memref<1x384xf32, #tpu.memory_space<any>>) target(%336 : memref<1x384xf32, #tpu.memory_space<vmem>>) target_semaphore(%338 : memref<!tpu.dma_semaphore, #tpu.memory_space<semaphore_mem>>)
    %c1_i32_226 = arith.constant 1 : i32
    %c0_i32_227 = arith.constant 0 : i32
    %c0_i32_228 = arith.constant 0 : i32
    %c0_i32_229 = arith.constant 0 : i32
    %339 = tpu.memref_slice %arg2[%c0_i32_228, %c0_i32_229] : memref<1000x384xf32, #tpu.memory_space<any>> -> memref<1x384xf32, #tpu.memory_space<any>>
    %c16_i32_230 = arith.constant 16 : i32
    %c0_i32_231 = arith.constant 0 : i32
    %340 = tpu.memref_slice %arg3[%c16_i32_230, %c0_i32_231] : memref<32x384xf32, #tpu.memory_space<vmem>> -> memref<1x384xf32, #tpu.memory_space<vmem>>
    %341 = tpu.memref_slice %arg4[%c0_i32_227] : memref<16x!tpu.dma_semaphore, #tpu.memory_space<semaphore_mem>> -> memref<1x!tpu.dma_semaphore, #tpu.memory_space<semaphore_mem>>
    %342 = tpu.memref_squeeze %341 : memref<1x!tpu.dma_semaphore, #tpu.memory_space<semaphore_mem>> -> memref<!tpu.dma_semaphore, #tpu.memory_space<semaphore_mem>>
    tpu.wait_dma2 semaphore(%342 : memref<!tpu.dma_semaphore, #tpu.memory_space<semaphore_mem>>) src(%339 : memref<1x384xf32, #tpu.memory_space<any>>) dst(%340 : memref<1x384xf32, #tpu.memory_space<vmem>>)
    %c1_i32_232 = arith.constant 1 : i32
    %c0_i32_233 = arith.constant 0 : i32
    %c0_i32_234 = arith.constant 0 : i32
    %343 = tpu.memref_slice %arg2[%c0_i32_233, %c0_i32_234] : memref<1000x384xf32, #tpu.memory_space<any>> -> memref<1x384xf32, #tpu.memory_space<any>>
    %c17_i32 = arith.constant 17 : i32
    %c0_i32_235 = arith.constant 0 : i32
    %344 = tpu.memref_slice %arg3[%c17_i32, %c0_i32_235] : memref<32x384xf32, #tpu.memory_space<vmem>> -> memref<1x384xf32, #tpu.memory_space<vmem>>
    %345 = tpu.memref_slice %arg4[%c1_i32_232] : memref<16x!tpu.dma_semaphore, #tpu.memory_space<semaphore_mem>> -> memref<1x!tpu.dma_semaphore, #tpu.memory_space<semaphore_mem>>
    %346 = tpu.memref_squeeze %345 : memref<1x!tpu.dma_semaphore, #tpu.memory_space<semaphore_mem>> -> memref<!tpu.dma_semaphore, #tpu.memory_space<semaphore_mem>>
    tpu.wait_dma2 semaphore(%346 : memref<!tpu.dma_semaphore, #tpu.memory_space<semaphore_mem>>) src(%343 : memref<1x384xf32, #tpu.memory_space<any>>) dst(%344 : memref<1x384xf32, #tpu.memory_space<vmem>>)
    %c2_i32_236 = arith.constant 2 : i32
    %c0_i32_237 = arith.constant 0 : i32
    %c0_i32_238 = arith.constant 0 : i32
    %347 = tpu.memref_slice %arg2[%c0_i32_237, %c0_i32_238] : memref<1000x384xf32, #tpu.memory_space<any>> -> memref<1x384xf32, #tpu.memory_space<any>>
    %c18_i32 = arith.constant 18 : i32
    %c0_i32_239 = arith.constant 0 : i32
    %348 = tpu.memref_slice %arg3[%c18_i32, %c0_i32_239] : memref<32x384xf32, #tpu.memory_space<vmem>> -> memref<1x384xf32, #tpu.memory_space<vmem>>
    %349 = tpu.memref_slice %arg4[%c2_i32_236] : memref<16x!tpu.dma_semaphore, #tpu.memory_space<semaphore_mem>> -> memref<1x!tpu.dma_semaphore, #tpu.memory_space<semaphore_mem>>
    %350 = tpu.memref_squeeze %349 : memref<1x!tpu.dma_semaphore, #tpu.memory_space<semaphore_mem>> -> memref<!tpu.dma_semaphore, #tpu.memory_space<semaphore_mem>>
    tpu.wait_dma2 semaphore(%350 : memref<!tpu.dma_semaphore, #tpu.memory_space<semaphore_mem>>) src(%347 : memref<1x384xf32, #tpu.memory_space<any>>) dst(%348 : memref<1x384xf32, #tpu.memory_space<vmem>>)
    %c3_i32_240 = arith.constant 3 : i32
    %c0_i32_241 = arith.constant 0 : i32
    %c0_i32_242 = arith.constant 0 : i32
    %351 = tpu.memref_slice %arg2[%c0_i32_241, %c0_i32_242] : memref<1000x384xf32, #tpu.memory_space<any>> -> memref<1x384xf32, #tpu.memory_space<any>>
    %c19_i32 = arith.constant 19 : i32
    %c0_i32_243 = arith.constant 0 : i32
    %352 = tpu.memref_slice %arg3[%c19_i32, %c0_i32_243] : memref<32x384xf32, #tpu.memory_space<vmem>> -> memref<1x384xf32, #tpu.memory_space<vmem>>
    %353 = tpu.memref_slice %arg4[%c3_i32_240] : memref<16x!tpu.dma_semaphore, #tpu.memory_space<semaphore_mem>> -> memref<1x!tpu.dma_semaphore, #tpu.memory_space<semaphore_mem>>
    %354 = tpu.memref_squeeze %353 : memref<1x!tpu.dma_semaphore, #tpu.memory_space<semaphore_mem>> -> memref<!tpu.dma_semaphore, #tpu.memory_space<semaphore_mem>>
    tpu.wait_dma2 semaphore(%354 : memref<!tpu.dma_semaphore, #tpu.memory_space<semaphore_mem>>) src(%351 : memref<1x384xf32, #tpu.memory_space<any>>) dst(%352 : memref<1x384xf32, #tpu.memory_space<vmem>>)
    %c4_i32_244 = arith.constant 4 : i32
    %c0_i32_245 = arith.constant 0 : i32
    %c0_i32_246 = arith.constant 0 : i32
    %355 = tpu.memref_slice %arg2[%c0_i32_245, %c0_i32_246] : memref<1000x384xf32, #tpu.memory_space<any>> -> memref<1x384xf32, #tpu.memory_space<any>>
    %c20_i32 = arith.constant 20 : i32
    %c0_i32_247 = arith.constant 0 : i32
    %356 = tpu.memref_slice %arg3[%c20_i32, %c0_i32_247] : memref<32x384xf32, #tpu.memory_space<vmem>> -> memref<1x384xf32, #tpu.memory_space<vmem>>
    %357 = tpu.memref_slice %arg4[%c4_i32_244] : memref<16x!tpu.dma_semaphore, #tpu.memory_space<semaphore_mem>> -> memref<1x!tpu.dma_semaphore, #tpu.memory_space<semaphore_mem>>
    %358 = tpu.memref_squeeze %357 : memref<1x!tpu.dma_semaphore, #tpu.memory_space<semaphore_mem>> -> memref<!tpu.dma_semaphore, #tpu.memory_space<semaphore_mem>>
    tpu.wait_dma2 semaphore(%358 : memref<!tpu.dma_semaphore, #tpu.memory_space<semaphore_mem>>) src(%355 : memref<1x384xf32, #tpu.memory_space<any>>) dst(%356 : memref<1x384xf32, #tpu.memory_space<vmem>>)
    %c5_i32_248 = arith.constant 5 : i32
    %c0_i32_249 = arith.constant 0 : i32
    %c0_i32_250 = arith.constant 0 : i32
    %359 = tpu.memref_slice %arg2[%c0_i32_249, %c0_i32_250] : memref<1000x384xf32, #tpu.memory_space<any>> -> memref<1x384xf32, #tpu.memory_space<any>>
    %c21_i32 = arith.constant 21 : i32
    %c0_i32_251 = arith.constant 0 : i32
    %360 = tpu.memref_slice %arg3[%c21_i32, %c0_i32_251] : memref<32x384xf32, #tpu.memory_space<vmem>> -> memref<1x384xf32, #tpu.memory_space<vmem>>
    %361 = tpu.memref_slice %arg4[%c5_i32_248] : memref<16x!tpu.dma_semaphore, #tpu.memory_space<semaphore_mem>> -> memref<1x!tpu.dma_semaphore, #tpu.memory_space<semaphore_mem>>
    %362 = tpu.memref_squeeze %361 : memref<1x!tpu.dma_semaphore, #tpu.memory_space<semaphore_mem>> -> memref<!tpu.dma_semaphore, #tpu.memory_space<semaphore_mem>>
    tpu.wait_dma2 semaphore(%362 : memref<!tpu.dma_semaphore, #tpu.memory_space<semaphore_mem>>) src(%359 : memref<1x384xf32, #tpu.memory_space<any>>) dst(%360 : memref<1x384xf32, #tpu.memory_space<vmem>>)
    %c6_i32_252 = arith.constant 6 : i32
    %c0_i32_253 = arith.constant 0 : i32
    %c0_i32_254 = arith.constant 0 : i32
    %363 = tpu.memref_slice %arg2[%c0_i32_253, %c0_i32_254] : memref<1000x384xf32, #tpu.memory_space<any>> -> memref<1x384xf32, #tpu.memory_space<any>>
    %c22_i32 = arith.constant 22 : i32
    %c0_i32_255 = arith.constant 0 : i32
    %364 = tpu.memref_slice %arg3[%c22_i32, %c0_i32_255] : memref<32x384xf32, #tpu.memory_space<vmem>> -> memref<1x384xf32, #tpu.memory_space<vmem>>
    %365 = tpu.memref_slice %arg4[%c6_i32_252] : memref<16x!tpu.dma_semaphore, #tpu.memory_space<semaphore_mem>> -> memref<1x!tpu.dma_semaphore, #tpu.memory_space<semaphore_mem>>
    %366 = tpu.memref_squeeze %365 : memref<1x!tpu.dma_semaphore, #tpu.memory_space<semaphore_mem>> -> memref<!tpu.dma_semaphore, #tpu.memory_space<semaphore_mem>>
    tpu.wait_dma2 semaphore(%366 : memref<!tpu.dma_semaphore, #tpu.memory_space<semaphore_mem>>) src(%363 : memref<1x384xf32, #tpu.memory_space<any>>) dst(%364 : memref<1x384xf32, #tpu.memory_space<vmem>>)
    %c7_i32_256 = arith.constant 7 : i32
    %c0_i32_257 = arith.constant 0 : i32
    %c0_i32_258 = arith.constant 0 : i32
    %367 = tpu.memref_slice %arg2[%c0_i32_257, %c0_i32_258] : memref<1000x384xf32, #tpu.memory_space<any>> -> memref<1x384xf32, #tpu.memory_space<any>>
    %c23_i32 = arith.constant 23 : i32
    %c0_i32_259 = arith.constant 0 : i32
    %368 = tpu.memref_slice %arg3[%c23_i32, %c0_i32_259] : memref<32x384xf32, #tpu.memory_space<vmem>> -> memref<1x384xf32, #tpu.memory_space<vmem>>
    %369 = tpu.memref_slice %arg4[%c7_i32_256] : memref<16x!tpu.dma_semaphore, #tpu.memory_space<semaphore_mem>> -> memref<1x!tpu.dma_semaphore, #tpu.memory_space<semaphore_mem>>
    %370 = tpu.memref_squeeze %369 : memref<1x!tpu.dma_semaphore, #tpu.memory_space<semaphore_mem>> -> memref<!tpu.dma_semaphore, #tpu.memory_space<semaphore_mem>>
    tpu.wait_dma2 semaphore(%370 : memref<!tpu.dma_semaphore, #tpu.memory_space<semaphore_mem>>) src(%367 : memref<1x384xf32, #tpu.memory_space<any>>) dst(%368 : memref<1x384xf32, #tpu.memory_space<vmem>>)
    %c8_i32_260 = arith.constant 8 : i32
    %c0_i32_261 = arith.constant 0 : i32
    %c0_i32_262 = arith.constant 0 : i32
    %371 = tpu.memref_slice %arg2[%c0_i32_261, %c0_i32_262] : memref<1000x384xf32, #tpu.memory_space<any>> -> memref<1x384xf32, #tpu.memory_space<any>>
    %c24_i32 = arith.constant 24 : i32
    %c0_i32_263 = arith.constant 0 : i32
    %372 = tpu.memref_slice %arg3[%c24_i32, %c0_i32_263] : memref<32x384xf32, #tpu.memory_space<vmem>> -> memref<1x384xf32, #tpu.memory_space<vmem>>
    %373 = tpu.memref_slice %arg4[%c8_i32_260] : memref<16x!tpu.dma_semaphore, #tpu.memory_space<semaphore_mem>> -> memref<1x!tpu.dma_semaphore, #tpu.memory_space<semaphore_mem>>
    %374 = tpu.memref_squeeze %373 : memref<1x!tpu.dma_semaphore, #tpu.memory_space<semaphore_mem>> -> memref<!tpu.dma_semaphore, #tpu.memory_space<semaphore_mem>>
    tpu.wait_dma2 semaphore(%374 : memref<!tpu.dma_semaphore, #tpu.memory_space<semaphore_mem>>) src(%371 : memref<1x384xf32, #tpu.memory_space<any>>) dst(%372 : memref<1x384xf32, #tpu.memory_space<vmem>>)
    %c9_i32_264 = arith.constant 9 : i32
    %c0_i32_265 = arith.constant 0 : i32
    %c0_i32_266 = arith.constant 0 : i32
    %375 = tpu.memref_slice %arg2[%c0_i32_265, %c0_i32_266] : memref<1000x384xf32, #tpu.memory_space<any>> -> memref<1x384xf32, #tpu.memory_space<any>>
    %c25_i32 = arith.constant 25 : i32
    %c0_i32_267 = arith.constant 0 : i32
    %376 = tpu.memref_slice %arg3[%c25_i32, %c0_i32_267] : memref<32x384xf32, #tpu.memory_space<vmem>> -> memref<1x384xf32, #tpu.memory_space<vmem>>
    %377 = tpu.memref_slice %arg4[%c9_i32_264] : memref<16x!tpu.dma_semaphore, #tpu.memory_space<semaphore_mem>> -> memref<1x!tpu.dma_semaphore, #tpu.memory_space<semaphore_mem>>
    %378 = tpu.memref_squeeze %377 : memref<1x!tpu.dma_semaphore, #tpu.memory_space<semaphore_mem>> -> memref<!tpu.dma_semaphore, #tpu.memory_space<semaphore_mem>>
    tpu.wait_dma2 semaphore(%378 : memref<!tpu.dma_semaphore, #tpu.memory_space<semaphore_mem>>) src(%375 : memref<1x384xf32, #tpu.memory_space<any>>) dst(%376 : memref<1x384xf32, #tpu.memory_space<vmem>>)
    %c10_i32_268 = arith.constant 10 : i32
    %c0_i32_269 = arith.constant 0 : i32
    %c0_i32_270 = arith.constant 0 : i32
    %379 = tpu.memref_slice %arg2[%c0_i32_269, %c0_i32_270] : memref<1000x384xf32, #tpu.memory_space<any>> -> memref<1x384xf32, #tpu.memory_space<any>>
    %c26_i32 = arith.constant 26 : i32
    %c0_i32_271 = arith.constant 0 : i32
    %380 = tpu.memref_slice %arg3[%c26_i32, %c0_i32_271] : memref<32x384xf32, #tpu.memory_space<vmem>> -> memref<1x384xf32, #tpu.memory_space<vmem>>
    %381 = tpu.memref_slice %arg4[%c10_i32_268] : memref<16x!tpu.dma_semaphore, #tpu.memory_space<semaphore_mem>> -> memref<1x!tpu.dma_semaphore, #tpu.memory_space<semaphore_mem>>
    %382 = tpu.memref_squeeze %381 : memref<1x!tpu.dma_semaphore, #tpu.memory_space<semaphore_mem>> -> memref<!tpu.dma_semaphore, #tpu.memory_space<semaphore_mem>>
    tpu.wait_dma2 semaphore(%382 : memref<!tpu.dma_semaphore, #tpu.memory_space<semaphore_mem>>) src(%379 : memref<1x384xf32, #tpu.memory_space<any>>) dst(%380 : memref<1x384xf32, #tpu.memory_space<vmem>>)
    %c11_i32_272 = arith.constant 11 : i32
    %c0_i32_273 = arith.constant 0 : i32
    %c0_i32_274 = arith.constant 0 : i32
    %383 = tpu.memref_slice %arg2[%c0_i32_273, %c0_i32_274] : memref<1000x384xf32, #tpu.memory_space<any>> -> memref<1x384xf32, #tpu.memory_space<any>>
    %c27_i32 = arith.constant 27 : i32
    %c0_i32_275 = arith.constant 0 : i32
    %384 = tpu.memref_slice %arg3[%c27_i32, %c0_i32_275] : memref<32x384xf32, #tpu.memory_space<vmem>> -> memref<1x384xf32, #tpu.memory_space<vmem>>
    %385 = tpu.memref_slice %arg4[%c11_i32_272] : memref<16x!tpu.dma_semaphore, #tpu.memory_space<semaphore_mem>> -> memref<1x!tpu.dma_semaphore, #tpu.memory_space<semaphore_mem>>
    %386 = tpu.memref_squeeze %385 : memref<1x!tpu.dma_semaphore, #tpu.memory_space<semaphore_mem>> -> memref<!tpu.dma_semaphore, #tpu.memory_space<semaphore_mem>>
    tpu.wait_dma2 semaphore(%386 : memref<!tpu.dma_semaphore, #tpu.memory_space<semaphore_mem>>) src(%383 : memref<1x384xf32, #tpu.memory_space<any>>) dst(%384 : memref<1x384xf32, #tpu.memory_space<vmem>>)
    %c12_i32_276 = arith.constant 12 : i32
    %c0_i32_277 = arith.constant 0 : i32
    %c0_i32_278 = arith.constant 0 : i32
    %387 = tpu.memref_slice %arg2[%c0_i32_277, %c0_i32_278] : memref<1000x384xf32, #tpu.memory_space<any>> -> memref<1x384xf32, #tpu.memory_space<any>>
    %c28_i32 = arith.constant 28 : i32
    %c0_i32_279 = arith.constant 0 : i32
    %388 = tpu.memref_slice %arg3[%c28_i32, %c0_i32_279] : memref<32x384xf32, #tpu.memory_space<vmem>> -> memref<1x384xf32, #tpu.memory_space<vmem>>
    %389 = tpu.memref_slice %arg4[%c12_i32_276] : memref<16x!tpu.dma_semaphore, #tpu.memory_space<semaphore_mem>> -> memref<1x!tpu.dma_semaphore, #tpu.memory_space<semaphore_mem>>
    %390 = tpu.memref_squeeze %389 : memref<1x!tpu.dma_semaphore, #tpu.memory_space<semaphore_mem>> -> memref<!tpu.dma_semaphore, #tpu.memory_space<semaphore_mem>>
    tpu.wait_dma2 semaphore(%390 : memref<!tpu.dma_semaphore, #tpu.memory_space<semaphore_mem>>) src(%387 : memref<1x384xf32, #tpu.memory_space<any>>) dst(%388 : memref<1x384xf32, #tpu.memory_space<vmem>>)
    %c13_i32_280 = arith.constant 13 : i32
    %c0_i32_281 = arith.constant 0 : i32
    %c0_i32_282 = arith.constant 0 : i32
    %391 = tpu.memref_slice %arg2[%c0_i32_281, %c0_i32_282] : memref<1000x384xf32, #tpu.memory_space<any>> -> memref<1x384xf32, #tpu.memory_space<any>>
    %c29_i32 = arith.constant 29 : i32
    %c0_i32_283 = arith.constant 0 : i32
    %392 = tpu.memref_slice %arg3[%c29_i32, %c0_i32_283] : memref<32x384xf32, #tpu.memory_space<vmem>> -> memref<1x384xf32, #tpu.memory_space<vmem>>
    %393 = tpu.memref_slice %arg4[%c13_i32_280] : memref<16x!tpu.dma_semaphore, #tpu.memory_space<semaphore_mem>> -> memref<1x!tpu.dma_semaphore, #tpu.memory_space<semaphore_mem>>
    %394 = tpu.memref_squeeze %393 : memref<1x!tpu.dma_semaphore, #tpu.memory_space<semaphore_mem>> -> memref<!tpu.dma_semaphore, #tpu.memory_space<semaphore_mem>>
    tpu.wait_dma2 semaphore(%394 : memref<!tpu.dma_semaphore, #tpu.memory_space<semaphore_mem>>) src(%391 : memref<1x384xf32, #tpu.memory_space<any>>) dst(%392 : memref<1x384xf32, #tpu.memory_space<vmem>>)
    %c14_i32_284 = arith.constant 14 : i32
    %c0_i32_285 = arith.constant 0 : i32
    %c0_i32_286 = arith.constant 0 : i32
    %395 = tpu.memref_slice %arg2[%c0_i32_285, %c0_i32_286] : memref<1000x384xf32, #tpu.memory_space<any>> -> memref<1x384xf32, #tpu.memory_space<any>>
    %c30_i32 = arith.constant 30 : i32
    %c0_i32_287 = arith.constant 0 : i32
    %396 = tpu.memref_slice %arg3[%c30_i32, %c0_i32_287] : memref<32x384xf32, #tpu.memory_space<vmem>> -> memref<1x384xf32, #tpu.memory_space<vmem>>
    %397 = tpu.memref_slice %arg4[%c14_i32_284] : memref<16x!tpu.dma_semaphore, #tpu.memory_space<semaphore_mem>> -> memref<1x!tpu.dma_semaphore, #tpu.memory_space<semaphore_mem>>
    %398 = tpu.memref_squeeze %397 : memref<1x!tpu.dma_semaphore, #tpu.memory_space<semaphore_mem>> -> memref<!tpu.dma_semaphore, #tpu.memory_space<semaphore_mem>>
    tpu.wait_dma2 semaphore(%398 : memref<!tpu.dma_semaphore, #tpu.memory_space<semaphore_mem>>) src(%395 : memref<1x384xf32, #tpu.memory_space<any>>) dst(%396 : memref<1x384xf32, #tpu.memory_space<vmem>>)
    %c15_i32_288 = arith.constant 15 : i32
    %c0_i32_289 = arith.constant 0 : i32
    %c0_i32_290 = arith.constant 0 : i32
    %399 = tpu.memref_slice %arg2[%c0_i32_289, %c0_i32_290] : memref<1000x384xf32, #tpu.memory_space<any>> -> memref<1x384xf32, #tpu.memory_space<any>>
    %c31_i32 = arith.constant 31 : i32
    %c0_i32_291 = arith.constant 0 : i32
    %400 = tpu.memref_slice %arg3[%c31_i32, %c0_i32_291] : memref<32x384xf32, #tpu.memory_space<vmem>> -> memref<1x384xf32, #tpu.memory_space<vmem>>
    %401 = tpu.memref_slice %arg4[%c15_i32_288] : memref<16x!tpu.dma_semaphore, #tpu.memory_space<semaphore_mem>> -> memref<1x!tpu.dma_semaphore, #tpu.memory_space<semaphore_mem>>
    %402 = tpu.memref_squeeze %401 : memref<1x!tpu.dma_semaphore, #tpu.memory_space<semaphore_mem>> -> memref<!tpu.dma_semaphore, #tpu.memory_space<semaphore_mem>>
    tpu.wait_dma2 semaphore(%402 : memref<!tpu.dma_semaphore, #tpu.memory_space<semaphore_mem>>) src(%399 : memref<1x384xf32, #tpu.memory_space<any>>) dst(%400 : memref<1x384xf32, #tpu.memory_space<vmem>>)
    return
  }
  func.func @transform_1(%arg0: i32, %arg1: memref<64xi32, #tpu.memory_space<smem>>) -> (i32, i32) {
    %c0_i32 = arith.constant 0 : i32
    %c0_i32_0 = arith.constant 0 : i32
    return %arg0, %c0_i32 : i32, i32
  }
}

</mosaic_0001>

<llo_original>
// kernel: tpu_custom_call.1
$region0: #{tpu_custom_call.1}
  #allocation0 [shape = 'u32[]', space=smem, size = 0x4, offset = 0x4, fixed_abs, tag = 'smem constant byte address 0x4 - core index']
  #allocation1 [shape = 'u32[144,128]{1,0:T(1,128)}', space=vmem, size = 0x12000, scoped, tag = 'internal scratch']
  #allocation2 [shape = 's32[16]{0}', space=sflag, size = 0x40, scoped, tag = 'scratch operand']
  #allocation3 [shape = 's32[1]{0}', space=sflag, size = 0x4, scoped, tag = 'scoped memory for tpu_custom_call.1']
  #allocation4 [shape = 'u8[512]{0}', space=smem, size = 0x200, scoped, tag = 'prefetched SMEM operand 0']
  #allocation7 [shape = 's32[]', space=sflag, size = 0x4, offset = 0, fixed_abs, tag = 'sflag constant byte address 0x0 - dummy sync flag']
  #allocation8 [shape = 's32[]', space=sflag, size = 0x4, offset = 0, fixed_abs, tag = 'sflag constant byte address 0x0 - dummy sync flag']
  #allocation9 [shape = 's32[]', space=sflag, size = 0x4, offset = 0, fixed_abs, tag = 'sflag constant byte address 0x0 - dummy sync flag']
  #allocation10 [shape = 's32[]', space=sflag, size = 0x4, offset = 0, fixed_abs, tag = 'sflag constant byte address 0x0 - dummy sync flag']
  #allocation11 [shape = 's32[]', space=sflag, size = 0x4, offset = 0, fixed_abs, tag = 'sflag constant byte address 0x0 - dummy sync flag']
  #allocation12 [shape = 's32[]', space=sflag, size = 0x4, offset = 0, fixed_abs, tag = 'sflag constant byte address 0x0 - dummy sync flag']
  #allocation13 [shape = 's32[]', space=sflag, size = 0x4, offset = 0, fixed_abs, tag = 'sflag constant byte address 0x0 - dummy sync flag']
  #allocation14 [shape = 's32[]', space=sflag, size = 0x4, offset = 0, fixed_abs, tag = 'sflag constant byte address 0x0 - dummy sync flag']
  #allocation15 [shape = 's32[]', space=sflag, size = 0x4, offset = 0, fixed_abs, tag = 'sflag constant byte address 0x0 - dummy sync flag']
  #allocation16 [shape = 's32[]', space=sflag, size = 0x4, offset = 0, fixed_abs, tag = 'sflag constant byte address 0x0 - dummy sync flag']
  #allocation17 [shape = 's32[]', space=sflag, size = 0x4, offset = 0, fixed_abs, tag = 'sflag constant byte address 0x0 - dummy sync flag']
  #allocation18 [shape = 's32[]', space=sflag, size = 0x4, offset = 0, fixed_abs, tag = 'sflag constant byte address 0x0 - dummy sync flag']
  #allocation19 [shape = 's32[]', space=sflag, size = 0x4, offset = 0, fixed_abs, tag = 'sflag constant byte address 0x0 - dummy sync flag']
  #allocation20 [shape = 's32[]', space=sflag, size = 0x4, offset = 0, fixed_abs, tag = 'sflag constant byte address 0x0 - dummy sync flag']
  #allocation21 [shape = 's32[]', space=sflag, size = 0x4, offset = 0, fixed_abs, tag = 'sflag constant byte address 0x0 - dummy sync flag']
  #allocation22 [shape = 's32[]', space=sflag, size = 0x4, offset = 0, fixed_abs, tag = 'sflag constant byte address 0x0 - dummy sync flag']
  #allocation23 [shape = 's32[]', space=sflag, size = 0x4, offset = 0, fixed_abs, tag = 'sflag constant byte address 0x0 - dummy sync flag']
  #allocation24 [shape = 's32[]', space=sflag, size = 0x4, offset = 0, fixed_abs, tag = 'sflag constant byte address 0x0 - dummy sync flag']
  #allocation25 [shape = 's32[]', space=sflag, size = 0x4, offset = 0, fixed_abs, tag = 'sflag constant byte address 0x0 - dummy sync flag']
  #allocation26 [shape = 's32[]', space=sflag, size = 0x4, offset = 0, fixed_abs, tag = 'sflag constant byte address 0x0 - dummy sync flag']
  #allocation27 [shape = 's32[]', space=sflag, size = 0x4, offset = 0, fixed_abs, tag = 'sflag constant byte address 0x0 - dummy sync flag']
  #allocation28 [shape = 's32[]', space=sflag, size = 0x4, offset = 0, fixed_abs, tag = 'sflag constant byte address 0x0 - dummy sync flag']
  #allocation29 [shape = 's32[]', space=sflag, size = 0x4, offset = 0, fixed_abs, tag = 'sflag constant byte address 0x0 - dummy sync flag']
  #allocation30 [shape = 's32[]', space=sflag, size = 0x4, offset = 0, fixed_abs, tag = 'sflag constant byte address 0x0 - dummy sync flag']
  #allocation31 [shape = 's32[]', space=sflag, size = 0x4, offset = 0, fixed_abs, tag = 'sflag constant byte address 0x0 - dummy sync flag']
  #allocation32 [shape = 's32[]', space=sflag, size = 0x4, offset = 0, fixed_abs, tag = 'sflag constant byte address 0x0 - dummy sync flag']
  #allocation33 [shape = 's32[]', space=sflag, size = 0x4, offset = 0, fixed_abs, tag = 'sflag constant byte address 0x0 - dummy sync flag']
  #allocation34 [shape = 's32[]', space=sflag, size = 0x4, offset = 0, fixed_abs, tag = 'sflag constant byte address 0x0 - dummy sync flag']
  #allocation35 [shape = 's32[]', space=sflag, size = 0x4, offset = 0, fixed_abs, tag = 'sflag constant byte address 0x0 - dummy sync flag']
  #allocation36 [shape = 's32[]', space=sflag, size = 0x4, offset = 0, fixed_abs, tag = 'sflag constant byte address 0x0 - dummy sync flag']
  #allocation37 [shape = 's32[]', space=sflag, size = 0x4, offset = 0, fixed_abs, tag = 'sflag constant byte address 0x0 - dummy sync flag']
  #allocation38 [shape = 's32[]', space=sflag, size = 0x4, offset = 0, fixed_abs, tag = 'sflag constant byte address 0x0 - dummy sync flag']
  %s0 = inlined_call_operand.hbm [shape: s32[64], index: 0, kind: input, shape index: {}]
  %s1 = inlined_call_operand.hbm [shape: f32[1000,384], index: 1, kind: input, shape index: {}]
  %s2 = inlined_call_operand.hbm [shape: f32[64,384], index: 2, kind: output, shape index: {}]
  %s3 = sld [smem:[#allocation0]]
  $region25: #{tpu_custom_call.1} parent=0
    _
  %s5 = ssub.s32 1, %s3
  %s6 = scalar_select 0, %s5, %s3
  %8 = dma.hbm_to_smem %s0, 16, [#allocation4], [#allocation3]
  %9 = dma.done [#allocation3], 16
  %10 = sfence
  $region1: #{tpu_custom_call.1} parent=0
    #allocation5 [shape = 'u8[98304]{0}', space=vmem, size = 0x18000, scoped, tag = 'output window, operand 0']
    #allocation6 [shape = 's32[2]{0}', space=sflag, size = 0x8, scoped, tag = 'scoped memory for tpu_custom_call.1']
    %11 = vsyncpa [#allocation6], 0
    %s12 = scalar_lea.sflag [#allocation6], 1
    %13 = vsyncpa %s12, 0
    loop: start=0, step=1, limit=3
    $region2: #{tpu_custom_call.1} parent=1 // loop_pre_header
      _
    $region3: #{tpu_custom_call.1} parent=1 // loop_header
      %s15 = sphi 0, %s19
      %p16 = scmp.ge.s32.totalorder %s15, 3
      %s24 = sphi 0, %s26
      %s27 = sphi 0, %s24
      %s37 = sphi 0, %s27
    $region4: #{tpu_custom_call.1} parent=1 // loop_header_branch
      %18 = sbr.rel (%p16) target = $region8
    $region5: #{tpu_custom_call.1} parent=1 // loop_body
      %s20 = ssub.s32 %s15, 1
      %s21 = sadd.s32 %s15, 1
      %s22 = ssub.s32 %s15, %s21
      %p23 = scmp.eq.s32.totalorder %s22, 0
      %s25 = sadd.s32 %s24, 1
      %s26 = scalar_select %p23, %s24, %s25
      %p28 = pneg %p23
      %p29 = scmp.eq.s32.totalorder %s15, 1
      %p30 = por %p28, %p29
      %p31 = scmp.ne.s32.totalorder %s24, %s27
      %p32 = scmp.eq.s32.totalorder %s15, 0
      %p33 = por %p31, %p32
      %p34 = scmp.ne.s32.totalorder %s24, %s27
      %p35 = scmp.eq.s32.totalorder %s20, 1
      %p36 = por %p34, %p35
      %p38 = scmp.ne.s32.totalorder %s27, %s37
      %p39 = scmp.eq.s32.totalorder %s20, 0
      %p40 = por %p38, %p39
      %p41 = scmp.lt.s32.totalorder %s15, 2
      // Predicated region
      $region9: #{tpu_custom_call.1} parent=5 // pred_check
        %p42 = pneg %p41
      $region10: #{tpu_custom_call.1} parent=5 // pred_check_branch
        %44 = sbr.rel (%p42) target = $region12
      $region11: #{tpu_custom_call.1} parent=5 // pred_region
        %p45 = pneg %p33
        %p46 = pneg %p30
        %s47 = sand.u32 %s24, 1
        %s48 = scalar_lea.sflag [#allocation6], %s47
        %s49 = sand.u32 %s24, 1
        %s50 = smul.addr %s49, 96
        %s51 = scalar_lea.vmem [#allocation5], %s50
        %s52 = smul.u32 4, %s15
        %s53 = smul.u32 %s15, 32
        %s54 = sld [smem:[#allocation4 + %s53]]
        %s55 = sshrl.u32 %s54, 3
        %s56 = sand.u32 %s54, 7
        %s57 = smul.u32 %s55, 24
        %s58 = sadd.s32 %s56, %s57
        %s59 = smul.addr %s58, 16
        %s60 = scalar_lea.hbm %s1, %s59
        %s62 = sshll.u32 %s51, 4
        %s63 = int_to_ptr.vmem [resolvable:$true] %s62
        %65 = dma.hbm_to_vmem [thread:$0]  %s60, 48, %s63, [#allocation2], 128, 128, 1
        %s66 = sadd.s32 %s53, 1
        %s67 = sld [smem:[#allocation4 + %s66]]
        %s68 = sshrl.u32 %s67, 3
        %s69 = sand.u32 %s67, 7
        %s70 = smul.u32 %s68, 24
        %s71 = sadd.s32 %s69, %s70
        %s72 = smul.addr %s71, 16
        %s73 = scalar_lea.hbm %s1, %s72
        %s74 = scalar_lea.vmem %s51, 1 [#allocation5]
        %s75 = scalar_lea.sflag [#allocation2], 1
        %s77 = sshll.u32 %s74, 4
        %s78 = int_to_ptr.vmem [resolvable:$true] %s77
        %80 = dma.hbm_to_vmem [thread:$0]  %s73, 48, %s78, %s75, 128, 128, 1
        %s81 = sadd.s32 %s53, 2
        %s82 = sld [smem:[#allocation4 + %s81]]
        %s83 = sshrl.u32 %s82, 3
        %s84 = sand.u32 %s82, 7
        %s85 = smul.u32 %s83, 24
        %s86 = sadd.s32 %s84, %s85
        %s87 = smul.addr %s86, 16
        %s88 = scalar_lea.hbm %s1, %s87
        %s89 = scalar_lea.vmem %s51, 2 [#allocation5]
        %s90 = scalar_lea.sflag [#allocation2], 2
        %s92 = sshll.u32 %s89, 4
        %s93 = int_to_ptr.vmem [resolvable:$true] %s92
        %95 = dma.hbm_to_vmem [thread:$0]  %s88, 48, %s93, %s90, 128, 128, 1
        %s96 = sadd.s32 %s53, 3
        %s97 = sld [smem:[#allocation4 + %s96]]
        %s98 = sshrl.u32 %s97, 3
        %s99 = sand.u32 %s97, 7
        %s100 = smul.u32 %s98, 24
        %s101 = sadd.s32 %s99, %s100
        %s102 = smul.addr %s101, 16
        %s103 = scalar_lea.hbm %s1, %s102
        %s104 = scalar_lea.vmem %s51, 3 [#allocation5]
        %s105 = scalar_lea.sflag [#allocation2], 3
        %s107 = sshll.u32 %s104, 4
        %s108 = int_to_ptr.vmem [resolvable:$true] %s107
        %110 = dma.hbm_to_vmem [thread:$0]  %s103, 48, %s108, %s105, 128, 128, 1
        %s111 = sadd.s32 %s53, 4
        %s112 = sld [smem:[#allocation4 + %s111]]
        %s113 = sshrl.u32 %s112, 3
        %s114 = sand.u32 %s112, 7
        %s115 = smul.u32 %s113, 24
        %s116 = sadd.s32 %s114, %s115
        %s117 = smul.addr %s116, 16
        %s118 = scalar_lea.hbm %s1, %s117
        %s119 = scalar_lea.vmem %s51, 4 [#allocation5]
        %s120 = scalar_lea.sflag [#allocation2], 4
        %s122 = sshll.u32 %s119, 4
        %s123 = int_to_ptr.vmem [resolvable:$true] %s122
        %125 = dma.hbm_to_vmem [thread:$0]  %s118, 48, %s123, %s120, 128, 128, 1
        %s126 = sadd.s32 %s53, 5
        %s127 = sld [smem:[#allocation4 + %s126]]
        %s128 = sshrl.u32 %s127, 3
        %s129 = sand.u32 %s127, 7
        %s130 = smul.u32 %s128, 24
        %s131 = sadd.s32 %s129, %s130
        %s132 = smul.addr %s131, 16
        %s133 = scalar_lea.hbm %s1, %s132
        %s134 = scalar_lea.vmem %s51, 5 [#allocation5]
        %s135 = scalar_lea.sflag [#allocation2], 5
        %s137 = sshll.u32 %s134, 4
        %s138 = int_to_ptr.vmem [resolvable:$true] %s137
        %140 = dma.hbm_to_vmem [thread:$0]  %s133, 48, %s138, %s135, 128, 128, 1
        %s141 = sadd.s32 %s53, 6
        %s142 = sld [smem:[#allocation4 + %s141]]
        %s143 = sshrl.u32 %s142, 3
        %s144 = sand.u32 %s142, 7
        %s145 = smul.u32 %s143, 24
        %s146 = sadd.s32 %s144, %s145
        %s147 = smul.addr %s146, 16
        %s148 = scalar_lea.hbm %s1, %s147
        %s149 = scalar_lea.vmem %s51, 6 [#allocation5]
        %s150 = scalar_lea.sflag [#allocation2], 6
        %s152 = sshll.u32 %s149, 4
        %s153 = int_to_ptr.vmem [resolvable:$true] %s152
        %155 = dma.hbm_to_vmem [thread:$0]  %s148, 48, %s153, %s150, 128, 128, 1
        %s156 = sadd.s32 %s53, 7
        %s157 = sld [smem:[#allocation4 + %s156]]
        %s158 = sshrl.u32 %s157, 3
        %s159 = sand.u32 %s157, 7
        %s160 = smul.u32 %s158, 24
        %s161 = sadd.s32 %s159, %s160
        %s162 = smul.addr %s161, 16
        %s163 = scalar_lea.hbm %s1, %s162
        %s164 = scalar_lea.vmem %s51, 7 [#allocation5]
        %s165 = scalar_lea.sflag [#allocation2], 7
        %s167 = sshll.u32 %s164, 4
        %s168 = int_to_ptr.vmem [resolvable:$true] %s167
        %170 = dma.hbm_to_vmem [thread:$0]  %s163, 48, %s168, %s165, 128, 128, 1
        %s171 = sadd.s32 %s53, 8
        %s172 = sld [smem:[#allocation4 + %s171]]
        %s173 = sshrl.u32 %s172, 3
        %s174 = sand.u32 %s172, 7
        %s175 = smul.u32 %s173, 24
        %s176 = sadd.s32 %s174, %s175
        %s177 = smul.addr %s176, 16
        %s178 = scalar_lea.hbm %s1, %s177
        %s179 = scalar_lea.vmem %s51, 24 [#allocation5]
        %s180 = scalar_lea.sflag [#allocation2], 8
        %s182 = sshll.u32 %s179, 4
        %s183 = int_to_ptr.vmem [resolvable:$true] %s182
        %185 = dma.hbm_to_vmem [thread:$0]  %s178, 48, %s183, %s180, 128, 128, 1
        %s186 = sadd.s32 %s53, 9
        %s187 = sld [smem:[#allocation4 + %s186]]
        %s188 = sshrl.u32 %s187, 3
        %s189 = sand.u32 %s187, 7
        %s190 = smul.u32 %s188, 24
        %s191 = sadd.s32 %s189, %s190
        %s192 = smul.addr %s191, 16
        %s193 = scalar_lea.hbm %s1, %s192
        %s194 = scalar_lea.vmem %s51, 25 [#allocation5]
        %s195 = scalar_lea.sflag [#allocation2], 9
        %s197 = sshll.u32 %s194, 4
        %s198 = int_to_ptr.vmem [resolvable:$true] %s197
        %200 = dma.hbm_to_vmem [thread:$0]  %s193, 48, %s198, %s195, 128, 128, 1
        %s201 = sadd.s32 %s53, 10
        %s202 = sld [smem:[#allocation4 + %s201]]
        %s203 = sshrl.u32 %s202, 3
        %s204 = sand.u32 %s202, 7
        %s205 = smul.u32 %s203, 24
        %s206 = sadd.s32 %s204, %s205
        %s207 = smul.addr %s206, 16
        %s208 = scalar_lea.hbm %s1, %s207
        %s209 = scalar_lea.vmem %s51, 26 [#allocation5]
        %s210 = scalar_lea.sflag [#allocation2], 10
        %s212 = sshll.u32 %s209, 4
        %s213 = int_to_ptr.vmem [resolvable:$true] %s212
        %215 = dma.hbm_to_vmem [thread:$0]  %s208, 48, %s213, %s210, 128, 128, 1
        %s216 = sadd.s32 %s53, 11
        %s217 = sld [smem:[#allocation4 + %s216]]
        %s218 = sshrl.u32 %s217, 3
        %s219 = sand.u32 %s217, 7
        %s220 = smul.u32 %s218, 24
        %s221 = sadd.s32 %s219, %s220
        %s222 = smul.addr %s221, 16
        %s223 = scalar_lea.hbm %s1, %s222
        %s224 = scalar_lea.vmem %s51, 27 [#allocation5]
        %s225 = scalar_lea.sflag [#allocation2], 11
        %s227 = sshll.u32 %s224, 4
        %s228 = int_to_ptr.vmem [resolvable:$true] %s227
        %230 = dma.hbm_to_vmem [thread:$0]  %s223, 48, %s228, %s225, 128, 128, 1
        %s231 = sadd.s32 %s53, 12
        %s232 = sld [smem:[#allocation4 + %s231]]
        %s233 = sshrl.u32 %s232, 3
        %s234 = sand.u32 %s232, 7
        %s235 = smul.u32 %s233, 24
        %s236 = sadd.s32 %s234, %s235
        %s237 = smul.addr %s236, 16
        %s238 = scalar_lea.hbm %s1, %s237
        %s239 = scalar_lea.vmem %s51, 28 [#allocation5]
        %s240 = scalar_lea.sflag [#allocation2], 12
        %s242 = sshll.u32 %s239, 4
        %s243 = int_to_ptr.vmem [resolvable:$true] %s242
        %245 = dma.hbm_to_vmem [thread:$0]  %s238, 48, %s243, %s240, 128, 128, 1
        %s246 = sadd.s32 %s53, 13
        %s247 = sld [smem:[#allocation4 + %s246]]
        %s248 = sshrl.u32 %s247, 3
        %s249 = sand.u32 %s247, 7
        %s250 = smul.u32 %s248, 24
        %s251 = sadd.s32 %s249, %s250
        %s252 = smul.addr %s251, 16
        %s253 = scalar_lea.hbm %s1, %s252
        %s254 = scalar_lea.vmem %s51, 29 [#allocation5]
        %s255 = scalar_lea.sflag [#allocation2], 13
        %s257 = sshll.u32 %s254, 4
        %s258 = int_to_ptr.vmem [resolvable:$true] %s257
        %260 = dma.hbm_to_vmem [thread:$0]  %s253, 48, %s258, %s255, 128, 128, 1
        %s261 = sadd.s32 %s53, 14
        %s262 = sld [smem:[#allocation4 + %s261]]
        %s263 = sshrl.u32 %s262, 3
        %s264 = sand.u32 %s262, 7
        %s265 = smul.u32 %s263, 24
        %s266 = sadd.s32 %s264, %s265
        %s267 = smul.addr %s266, 16
        %s268 = scalar_lea.hbm %s1, %s267
        %s269 = scalar_lea.vmem %s51, 30 [#allocation5]
        %s270 = scalar_lea.sflag [#allocation2], 14
        %s272 = sshll.u32 %s269, 4
        %s273 = int_to_ptr.vmem [resolvable:$true] %s272
        %275 = dma.hbm_to_vmem [thread:$0]  %s268, 48, %s273, %s270, 128, 128, 1
        %s276 = sadd.s32 %s53, 15
        %s277 = sld [smem:[#allocation4 + %s276]]
        %s278 = sshrl.u32 %s277, 3
        %s279 = sand.u32 %s277, 7
        %s280 = smul.u32 %s278, 24
        %s281 = sadd.s32 %s279, %s280
        %s282 = smul.addr %s281, 16
        %s283 = scalar_lea.hbm %s1, %s282
        %s284 = scalar_lea.vmem %s51, 31 [#allocation5]
        %s285 = scalar_lea.sflag [#allocation2], 15
        %s287 = sshll.u32 %s284, 4
        %s288 = int_to_ptr.vmem [resolvable:$true] %s287
        %290 = dma.hbm_to_vmem [thread:$0]  %s283, 48, %s288, %s285, 128, 128, 1
        %s291 = sadd.s32 %s53, 16
        %s292 = sld [smem:[#allocation4 + %s291]]
        %s293 = sadd.s32 %s53, 17
        %s294 = sld [smem:[#allocation4 + %s293]]
        %s295 = sadd.s32 %s53, 18
        %s296 = sld [smem:[#allocation4 + %s295]]
        %s297 = sadd.s32 %s53, 19
        %s298 = sld [smem:[#allocation4 + %s297]]
        %s299 = sadd.s32 %s53, 20
        %s300 = sld [smem:[#allocation4 + %s299]]
        %s301 = sadd.s32 %s53, 21
        %s302 = sld [smem:[#allocation4 + %s301]]
        %s303 = sadd.s32 %s53, 22
        %s304 = sld [smem:[#allocation4 + %s303]]
        %s305 = sadd.s32 %s53, 23
        %s306 = sld [smem:[#allocation4 + %s305]]
        %s307 = sadd.s32 %s53, 24
        %s308 = sld [smem:[#allocation4 + %s307]]
        %s309 = sadd.s32 %s53, 25
        %s310 = sld [smem:[#allocation4 + %s309]]
        %s311 = sadd.s32 %s53, 26
        %s312 = sld [smem:[#allocation4 + %s311]]
        %s313 = sadd.s32 %s53, 27
        %s314 = sld [smem:[#allocation4 + %s313]]
        %s315 = sadd.s32 %s53, 28
        %s316 = sld [smem:[#allocation4 + %s315]]
        %s317 = sadd.s32 %s53, 29
        %s318 = sld [smem:[#allocation4 + %s317]]
        %s319 = sadd.s32 %s53, 30
        %s320 = sld [smem:[#allocation4 + %s319]]
        %s321 = sadd.s32 %s53, 31
        %s322 = sld [smem:[#allocation4 + %s321]]
        %s323 = smul.u32 1, 3
        %s324 = sshll.u32 %s323, 4
        %325 = dma.done [#allocation2], %s324
        %s326 = sshrl.u32 %s292, 3
        %s327 = sand.u32 %s292, 7
        %s328 = smul.u32 %s326, 24
        %s329 = sadd.s32 %s327, %s328
        %s330 = smul.addr %s329, 16
        %s331 = scalar_lea.hbm %s1, %s330
        %s332 = scalar_lea.vmem %s51, 48 [#allocation5]
        %s334 = sshll.u32 %s332, 4
        %s335 = int_to_ptr.vmem [resolvable:$true] %s334
        %337 = dma.hbm_to_vmem [thread:$0]  %s331, 48, %s335, [#allocation2], 128, 128, 1
        %s338 = sshll.u32 %s323, 4
        %339 = dma.done %s75, %s338
        %s340 = sshrl.u32 %s294, 3
        %s341 = sand.u32 %s294, 7
        %s342 = smul.u32 %s340, 24
        %s343 = sadd.s32 %s341, %s342
        %s344 = smul.addr %s343, 16
        %s345 = scalar_lea.hbm %s1, %s344
        %s346 = scalar_lea.vmem %s51, 49 [#allocation5]
        %s348 = sshll.u32 %s346, 4
        %s349 = int_to_ptr.vmem [resolvable:$true] %s348
        %351 = dma.hbm_to_vmem [thread:$0]  %s345, 48, %s349, %s75, 128, 128, 1
        %s352 = sshll.u32 %s323, 4
        %353 = dma.done %s90, %s352
        %s354 = sshrl.u32 %s296, 3
        %s355 = sand.u32 %s296, 7
        %s356 = smul.u32 %s354, 24
        %s357 = sadd.s32 %s355, %s356
        %s358 = smul.addr %s357, 16
        %s359 = scalar_lea.hbm %s1, %s358
        %s360 = scalar_lea.vmem %s51, 50 [#allocation5]
        %s362 = sshll.u32 %s360, 4
        %s363 = int_to_ptr.vmem [resolvable:$true] %s362
        %365 = dma.hbm_to_vmem [thread:$0]  %s359, 48, %s363, %s90, 128, 128, 1
        %s366 = sshll.u32 %s323, 4
        %367 = dma.done %s105, %s366
        %s368 = sshrl.u32 %s298, 3
        %s369 = sand.u32 %s298, 7
        %s370 = smul.u32 %s368, 24
        %s371 = sadd.s32 %s369, %s370
        %s372 = smul.addr %s371, 16
        %s373 = scalar_lea.hbm %s1, %s372
        %s374 = scalar_lea.vmem %s51, 51 [#allocation5]
        %s376 = sshll.u32 %s374, 4
        %s377 = int_to_ptr.vmem [resolvable:$true] %s376
        %379 = dma.hbm_to_vmem [thread:$0]  %s373, 48, %s377, %s105, 128, 128, 1
        %s380 = sshll.u32 %s323, 4
        %381 = dma.done %s120, %s380
        %s382 = sshrl.u32 %s300, 3
        %s383 = sand.u32 %s300, 7
        %s384 = smul.u32 %s382, 24
        %s385 = sadd.s32 %s383, %s384
        %s386 = smul.addr %s385, 16
        %s387 = scalar_lea.hbm %s1, %s386
        %s388 = scalar_lea.vmem %s51, 52 [#allocation5]
        %s390 = sshll.u32 %s388, 4
        %s391 = int_to_ptr.vmem [resolvable:$true] %s390
        %393 = dma.hbm_to_vmem [thread:$0]  %s387, 48, %s391, %s120, 128, 128, 1
        %s394 = sshll.u32 %s323, 4
        %395 = dma.done %s135, %s394
        %s396 = sshrl.u32 %s302, 3
        %s397 = sand.u32 %s302, 7
        %s398 = smul.u32 %s396, 24
        %s399 = sadd.s32 %s397, %s398
        %s400 = smul.addr %s399, 16
        %s401 = scalar_lea.hbm %s1, %s400
        %s402 = scalar_lea.vmem %s51, 53 [#allocation5]
        %s404 = sshll.u32 %s402, 4
        %s405 = int_to_ptr.vmem [resolvable:$true] %s404
        %407 = dma.hbm_to_vmem [thread:$0]  %s401, 48, %s405, %s135, 128, 128, 1
        %s408 = sshll.u32 %s323, 4
        %409 = dma.done %s150, %s408
        %s410 = sshrl.u32 %s304, 3
        %s411 = sand.u32 %s304, 7
        %s412 = smul.u32 %s410, 24
        %s413 = sadd.s32 %s411, %s412
        %s414 = smul.addr %s413, 16
        %s415 = scalar_lea.hbm %s1, %s414
        %s416 = scalar_lea.vmem %s51, 54 [#allocation5]
        %s418 = sshll.u32 %s416, 4
        %s419 = int_to_ptr.vmem [resolvable:$true] %s418
        %421 = dma.hbm_to_vmem [thread:$0]  %s415, 48, %s419, %s150, 128, 128, 1
        %s422 = sshll.u32 %s323, 4
        %423 = dma.done %s165, %s422
        %s424 = sshrl.u32 %s306, 3
        %s425 = sand.u32 %s306, 7
        %s426 = smul.u32 %s424, 24
        %s427 = sadd.s32 %s425, %s426
        %s428 = smul.addr %s427, 16
        %s429 = scalar_lea.hbm %s1, %s428
        %s430 = scalar_lea.vmem %s51, 55 [#allocation5]
        %s432 = sshll.u32 %s430, 4
        %s433 = int_to_ptr.vmem [resolvable:$true] %s432
        %435 = dma.hbm_to_vmem [thread:$0]  %s429, 48, %s433, %s165, 128, 128, 1
        %s436 = sshll.u32 %s323, 4
        %437 = dma.done %s180, %s436
        %s438 = sshrl.u32 %s308, 3
        %s439 = sand.u32 %s308, 7
        %s440 = smul.u32 %s438, 24
        %s441 = sadd.s32 %s439, %s440
        %s442 = smul.addr %s441, 16
        %s443 = scalar_lea.hbm %s1, %s442
        %s444 = scalar_lea.vmem %s51, 72 [#allocation5]
        %s446 = sshll.u32 %s444, 4
        %s447 = int_to_ptr.vmem [resolvable:$true] %s446
        %449 = dma.hbm_to_vmem [thread:$0]  %s443, 48, %s447, %s180, 128, 128, 1
        %s450 = sshll.u32 %s323, 4
        %451 = dma.done %s195, %s450
        %s452 = sshrl.u32 %s310, 3
        %s453 = sand.u32 %s310, 7
        %s454 = smul.u32 %s452, 24
        %s455 = sadd.s32 %s453, %s454
        %s456 = smul.addr %s455, 16
        %s457 = scalar_lea.hbm %s1, %s456
        %s458 = scalar_lea.vmem %s51, 73 [#allocation5]
        %s460 = sshll.u32 %s458, 4
        %s461 = int_to_ptr.vmem [resolvable:$true] %s460
        %463 = dma.hbm_to_vmem [thread:$0]  %s457, 48, %s461, %s195, 128, 128, 1
        %s464 = sshll.u32 %s323, 4
        %465 = dma.done %s210, %s464
        %s466 = sshrl.u32 %s312, 3
        %s467 = sand.u32 %s312, 7
        %s468 = smul.u32 %s466, 24
        %s469 = sadd.s32 %s467, %s468
        %s470 = smul.addr %s469, 16
        %s471 = scalar_lea.hbm %s1, %s470
        %s472 = scalar_lea.vmem %s51, 74 [#allocation5]
        %s474 = sshll.u32 %s472, 4
        %s475 = int_to_ptr.vmem [resolvable:$true] %s474
        %477 = dma.hbm_to_vmem [thread:$0]  %s471, 48, %s475, %s210, 128, 128, 1
        %s478 = sshll.u32 %s323, 4
        %479 = dma.done %s225, %s478
        %s480 = sshrl.u32 %s314, 3
        %s481 = sand.u32 %s314, 7
        %s482 = smul.u32 %s480, 24
        %s483 = sadd.s32 %s481, %s482
        %s484 = smul.addr %s483, 16
        %s485 = scalar_lea.hbm %s1, %s484
        %s486 = scalar_lea.vmem %s51, 75 [#allocation5]
        %s488 = sshll.u32 %s486, 4
        %s489 = int_to_ptr.vmem [resolvable:$true] %s488
        %491 = dma.hbm_to_vmem [thread:$0]  %s485, 48, %s489, %s225, 128, 128, 1
        %s492 = sshll.u32 %s323, 4
        %493 = dma.done %s240, %s492
        %s494 = sshrl.u32 %s316, 3
        %s495 = sand.u32 %s316, 7
        %s496 = smul.u32 %s494, 24
        %s497 = sadd.s32 %s495, %s496
        %s498 = smul.addr %s497, 16
        %s499 = scalar_lea.hbm %s1, %s498
        %s500 = scalar_lea.vmem %s51, 76 [#allocation5]
        %s502 = sshll.u32 %s500, 4
        %s503 = int_to_ptr.vmem [resolvable:$true] %s502
        %505 = dma.hbm_to_vmem [thread:$0]  %s499, 48, %s503, %s240, 128, 128, 1
        %s506 = sshll.u32 %s323, 4
        %507 = dma.done %s255, %s506
        %s508 = sshrl.u32 %s318, 3
        %s509 = sand.u32 %s318, 7
        %s510 = smul.u32 %s508, 24
        %s511 = sadd.s32 %s509, %s510
        %s512 = smul.addr %s511, 16
        %s513 = scalar_lea.hbm %s1, %s512
        %s514 = scalar_lea.vmem %s51, 77 [#allocation5]
        %s516 = sshll.u32 %s514, 4
        %s517 = int_to_ptr.vmem [resolvable:$true] %s516
        %519 = dma.hbm_to_vmem [thread:$0]  %s513, 48, %s517, %s255, 128, 128, 1
        %s520 = sshll.u32 %s323, 4
        %521 = dma.done %s270, %s520
        %s522 = sshrl.u32 %s320, 3
        %s523 = sand.u32 %s320, 7
        %s524 = smul.u32 %s522, 24
        %s525 = sadd.s32 %s523, %s524
        %s526 = smul.addr %s525, 16
        %s527 = scalar_lea.hbm %s1, %s526
        %s528 = scalar_lea.vmem %s51, 78 [#allocation5]
        %s530 = sshll.u32 %s528, 4
        %s531 = int_to_ptr.vmem [resolvable:$true] %s530
        %533 = dma.hbm_to_vmem [thread:$0]  %s527, 48, %s531, %s270, 128, 128, 1
        %s534 = sshll.u32 %s323, 4
        %535 = dma.done %s285, %s534
        %s536 = sshrl.u32 %s322, 3
        %s537 = sand.u32 %s322, 7
        %s538 = smul.u32 %s536, 24
        %s539 = sadd.s32 %s537, %s538
        %s540 = smul.addr %s539, 16
        %s541 = scalar_lea.hbm %s1, %s540
        %s542 = scalar_lea.vmem %s51, 79 [#allocation5]
        %s544 = sshll.u32 %s542, 4
        %s545 = int_to_ptr.vmem [resolvable:$true] %s544
        %547 = dma.hbm_to_vmem [thread:$0]  %s541, 48, %s545, %s285, 128, 128, 1
        %s548 = sshll.u32 %s323, 4
        %549 = dma.done [#allocation2], %s548
        %s550 = sshll.u32 %s323, 4
        %551 = dma.done %s75, %s550
        %s552 = sshll.u32 %s323, 4
        %553 = dma.done %s90, %s552
        %s554 = sshll.u32 %s323, 4
        %555 = dma.done %s105, %s554
        %s556 = sshll.u32 %s323, 4
        %557 = dma.done %s120, %s556
        %s558 = sshll.u32 %s323, 4
        %559 = dma.done %s135, %s558
        %s560 = sshll.u32 %s323, 4
        %561 = dma.done %s150, %s560
        %s562 = sshll.u32 %s323, 4
        %563 = dma.done %s165, %s562
        %s564 = sshll.u32 %s323, 4
        %565 = dma.done %s180, %s564
        %s566 = sshll.u32 %s323, 4
        %567 = dma.done %s195, %s566
        %s568 = sshll.u32 %s323, 4
        %569 = dma.done %s210, %s568
        %s570 = sshll.u32 %s323, 4
        %571 = dma.done %s225, %s570
        %s572 = sshll.u32 %s323, 4
        %573 = dma.done %s240, %s572
        %s574 = sshll.u32 %s323, 4
        %575 = dma.done %s255, %s574
        %s576 = sshll.u32 %s323, 4
        %577 = dma.done %s270, %s576
        %s578 = sshll.u32 %s323, 4
        %579 = dma.done %s285, %s578
        %s580 = sand.u32 %s24, 1
        %s581 = scalar_lea.sflag [#allocation6], %s580
        %s582 = sand.u32 %s24, 1
        %s583 = smul.addr %s582, 96
        %s584 = scalar_lea.vmem [#allocation5], %s583
        // Predicated region
        $region13: #{tpu_custom_call.1} parent=11 // pred_check
          %p585 = pneg %p30
        $region14: #{tpu_custom_call.1} parent=11 // pred_check_branch
          %587 = sbr.rel (%p585) target = $region16
        $region15: #{tpu_custom_call.1} parent=11 // pred_region
          %s588 = smul.u32 4, %s15
          %s590 = ssub.s32 1536, 1536
          %591 = vsyncadd %s581, %s590
          %s592 = smul.addr %s588, 3
          %s593 = smul.addr %s592, 128
          %s594 = scalar_lea.hbm %s2, %s593
          %s595 = sshll.u32 %s584, 4
          %s596 = int_to_ptr.vmem [resolvable:$true] %s595
          %601 = dma.vmem_to_hbm [thread:$0]  %s596, 1536, %s594, %s581, 384, 384, 24
        $region16: #{tpu_custom_call.1} parent=11 // pred_fallthru
          _
      $region12: #{tpu_custom_call.1} parent=5 // pred_fallthru
        _
      %p602 = scmp.le.s32.totalorder 1, %s15
      // Predicated region
      $region17: #{tpu_custom_call.1} parent=5 // pred_check
        %p603 = pneg %p602
      $region18: #{tpu_custom_call.1} parent=5 // pred_check_branch
        %605 = sbr.rel (%p603) target = $region20
      $region19: #{tpu_custom_call.1} parent=5 // pred_region
        %s606 = ssub.s32 %s15, 1
        // Predicated region
        $region21: #{tpu_custom_call.1} parent=19 // pred_check
          %p607 = pneg %p36
        $region22: #{tpu_custom_call.1} parent=19 // pred_check_branch
          %609 = sbr.rel (%p607) target = $region24
        $region23: #{tpu_custom_call.1} parent=19 // pred_region
          %s610 = sand.u32 %s27, 1
          %s611 = scalar_lea.sflag [#allocation6], %s610
          %s612 = sand.u32 %s27, 1
          %s613 = smul.addr %s612, 96
          %s614 = scalar_lea.vmem [#allocation5], %s613
          %615 = dma.done %s611, 1536
        $region24: #{tpu_custom_call.1} parent=19 // pred_fallthru
          _
      $region20: #{tpu_custom_call.1} parent=5 // pred_fallthru
        _
    $region6: #{tpu_custom_call.1} parent=1 // loop_footer
      %s19 = sadd.s32 1, %s15
    $region7: #{tpu_custom_call.1} parent=1 // loop_footer_branch
      %14 = sbr.rel target = $region3
    $region8: #{tpu_custom_call.1} parent=1 // loop_exit
      _
    %616 = vsyncpa [#allocation6], 1
    %s617 = scalar_lea.sflag [#allocation6], 1
    %618 = vsyncpa %s617, 1
  %619 = vsyncmov [#allocation2]
  %s620 = vpop.sfrf %619
  %p621 = scmp.eq.s32.totalorder %s620, 0
  %p622 = pneg %p621
  %624 = shalt.err (%p622)
  %s625 = scalar_lea.sflag [#allocation2], 1
  %626 = vsyncmov %s625
  %s627 = vpop.sfrf %626
  %p628 = scmp.eq.s32.totalorder %s627, 0
  %p629 = pneg %p628
  %631 = shalt.err (%p629)
  %s632 = scalar_lea.sflag [#allocation2], 2
  %633 = vsyncmov %s632
  %s634 = vpop.sfrf %633
  %p635 = scmp.eq.s32.totalorder %s634, 0
  %p636 = pneg %p635
  %638 = shalt.err (%p636)
  %s639 = scalar_lea.sflag [#allocation2], 3
  %640 = vsyncmov %s639
  %s641 = vpop.sfrf %640
  %p642 = scmp.eq.s32.totalorder %s641, 0
  %p643 = pneg %p642
  %645 = shalt.err (%p643)
  %s646 = scalar_lea.sflag [#allocation2], 4
  %647 = vsyncmov %s646
  %s648 = vpop.sfrf %647
  %p649 = scmp.eq.s32.totalorder %s648, 0
  %p650 = pneg %p649
  %652 = shalt.err (%p650)
  %s653 = scalar_lea.sflag [#allocation2], 5
  %654 = vsyncmov %s653
  %s655 = vpop.sfrf %654
  %p656 = scmp.eq.s32.totalorder %s655, 0
  %p657 = pneg %p656
  %659 = shalt.err (%p657)
  %s660 = scalar_lea.sflag [#allocation2], 6
  %661 = vsyncmov %s660
  %s662 = vpop.sfrf %661
  %p663 = scmp.eq.s32.totalorder %s662, 0
  %p664 = pneg %p663
  %666 = shalt.err (%p664)
  %s667 = scalar_lea.sflag [#allocation2], 7
  %668 = vsyncmov %s667
  %s669 = vpop.sfrf %668
  %p670 = scmp.eq.s32.totalorder %s669, 0
  %p671 = pneg %p670
  %673 = shalt.err (%p671)
  %s674 = scalar_lea.sflag [#allocation2], 8
  %675 = vsyncmov %s674
  %s676 = vpop.sfrf %675
  %p677 = scmp.eq.s32.totalorder %s676, 0
  %p678 = pneg %p677
  %680 = shalt.err (%p678)
  %s681 = scalar_lea.sflag [#allocation2], 9
  %682 = vsyncmov %s681
  %s683 = vpop.sfrf %682
  %p684 = scmp.eq.s32.totalorder %s683, 0
  %p685 = pneg %p684
  %687 = shalt.err (%p685)
  %s688 = scalar_lea.sflag [#allocation2], 10
  %689 = vsyncmov %s688
  %s690 = vpop.sfrf %689
  %p691 = scmp.eq.s32.totalorder %s690, 0
  %p692 = pneg %p691
  %694 = shalt.err (%p692)
  %s695 = scalar_lea.sflag [#allocation2], 11
  %696 = vsyncmov %s695
  %s697 = vpop.sfrf %696
  %p698 = scmp.eq.s32.totalorder %s697, 0
  %p699 = pneg %p698
  %701 = shalt.err (%p699)
  %s702 = scalar_lea.sflag [#allocation2], 12
  %703 = vsyncmov %s702
  %s704 = vpop.sfrf %703
  %p705 = scmp.eq.s32.totalorder %s704, 0
  %p706 = pneg %p705
  %708 = shalt.err (%p706)
  %s709 = scalar_lea.sflag [#allocation2], 13
  %710 = vsyncmov %s709
  %s711 = vpop.sfrf %710
  %p712 = scmp.eq.s32.totalorder %s711, 0
  %p713 = pneg %p712
  %715 = shalt.err (%p713)
  %s716 = scalar_lea.sflag [#allocation2], 14
  %717 = vsyncmov %s716
  %s718 = vpop.sfrf %717
  %p719 = scmp.eq.s32.totalorder %s718, 0
  %p720 = pneg %p719
  %722 = shalt.err (%p720)
  %s723 = scalar_lea.sflag [#allocation2], 15
  %724 = vsyncmov %s723
  %s725 = vpop.sfrf %724
  %p726 = scmp.eq.s32.totalorder %s725, 0
  %p727 = pneg %p726
  %729 = shalt.err (%p727)

</llo_original>
